<compile_context>
chip_gen: v7x
topology: tpu7x:2x2x1
jax: 0.10.0
libtpu: 0.0.40
codegen_flags: <defaults>
</compile_context>

<pallas_src>
import math
import functools

import jax
import jax.numpy as jnp
from jax.experimental import pallas as pl
from jax.experimental.pallas import tpu as pltpu


def _mha_fused_kernel(x_ref, wqkv_ref, bqkv_ref, wp_ref, bp_ref, o_ref,
                      heads_scratch, *, n_head, head_size, batch_per_step,
                      seq_len, inv_sqrt_c, attn_dtype, approx_recip):
    """One grid step: fused QKV proj + per-(batch, head) causal attention +
    output projection for `batch_per_step` batch elements."""
    T = seq_len
    Bp = batch_per_step
    C = n_head * head_size

    x = x_ref[0]                                                     # (Bp*T, C)

    # Fused QKV projection: single lane-dense (Bp*T, C) @ (C, 3C) MXU matmul.
    qkv = jnp.dot(x, wqkv_ref[...],
                  preferred_element_type=jnp.float32) + bqkv_ref[...]  # f32

    # Scale q instead of the (T, T) scores; -inf masked entries unaffected.
    q = (qkv[:, 0 * C:1 * C] * inv_sqrt_c).astype(attn_dtype)
    k = qkv[:, 1 * C:2 * C].astype(attn_dtype)
    v = qkv[:, 2 * C:3 * C].astype(attn_dtype)

    # Additive causal bias, built once per grid step and reused by every
    # (batch, head) pair: add instead of select.
    row = jax.lax.broadcasted_iota(jnp.int32, (T, T), 0)
    col = jax.lax.broadcasted_iota(jnp.int32, (T, T), 1)
    mask_bias = jnp.where(row >= col, jnp.float32(0.0),
                          jnp.float32(-jnp.inf))                     # (T, T) f32

    for b in range(Bp):                                              # static
        r0 = b * T
        qb = q[r0:r0 + T, :]
        kb = k[r0:r0 + T, :]
        vb = v[r0:r0 + T, :]
        for h in range(n_head):                                      # static
            c0 = h * head_size
            qh = qb[:, c0:c0 + head_size]                            # (T, Hs)
            kh = kb[:, c0:c0 + head_size]
            vh = vb[:, c0:c0 + head_size]

            # q @ k^T without an explicit transpose of k.
            s = jax.lax.dot_general(qh, kh, (((1,), (1,)), ((), ())),
                                    preferred_element_type=jnp.float32)
            s = s + mask_bias
            s = s - jnp.max(s, axis=-1, keepdims=True)
            p = jnp.exp(s)
            denom = jnp.sum(p, axis=-1, keepdims=True)
            # EUP approx reciprocal on the (loose-tolerance) bf16 path only;
            # exact on the f32 path to keep the strict accuracy check tight.
            p = p * pl.reciprocal(denom, approx=approx_recip)
            oh = jnp.dot(p.astype(attn_dtype), vh,
                         preferred_element_type=jnp.float32)         # (T, Hs)

            # Write this head's output at its static (row, lane) offset; keeps
            # only one head live at a time (no concat / lane-placement copies).
            heads_scratch[r0:r0 + T, c0:c0 + head_size] = oh

    # Output projection on the lane-dense (Bp*T, C) slab.
    heads = heads_scratch[...]
    out = jnp.dot(heads.astype(wp_ref.dtype), wp_ref[...],
                  preferred_element_type=jnp.float32) + bp_ref[...]
    o_ref[0] = out.astype(o_ref.dtype)


def prepare_params(params):
    """One-time weight prep: PyTorch (out, in) layout -> fused (in, out) layout.

    params (PyTorch nn.Linear layout):
      wq/wk/wv: (H, Hs, C), bq/bk/bv: (H, Hs), wp: (C, C), bp: (C,)
    Returns fused weights:
      wqkv: (C, 3C) with columns [Q_heads | K_heads | V_heads], head-major
      bqkv: (1, 3C), wp: (C, C) in (in, out), bp: (1, C)
    """
    H, Hs, C = params["wq"].shape

    def fuse(w):                                   # (H, Hs, C) -> (C, H*Hs)
        return jnp.transpose(w, (2, 0, 1)).reshape(C, H * Hs)

    wqkv = jnp.concatenate(
        [fuse(params["wq"]), fuse(params["wk"]), fuse(params["wv"])], axis=1)
    bqkv = jnp.concatenate(
        [params["bq"].reshape(-1), params["bk"].reshape(-1),
         params["bv"].reshape(-1)]).reshape(1, 3 * H * Hs)
    return {
        "wqkv": wqkv,                              # (C, 3C)
        "bqkv": bqkv,                              # (1, 3C)
        "wp": params["wp"].T,                      # (C, C), (in, out)
        "bp": params["bp"].reshape(1, C),          # (1, C)
        "n_head": H,
        "head_size": Hs,
    }


def _default_grid_steps(B):
    """1 grid step on single-TC chips (v5e/v6e); 2 parallel steps on chips with
    two TensorCores (v7x, and megacore v4/v5p) so both cores are used."""
    try:
        kind = jax.devices()[0].device_kind.lower()
    except Exception:  # pragma: no cover - detection failure -> safe default
        return 1
    if any(tag in kind for tag in ("v7", "v4", "v5p")):
        return 2 if (B % 2 == 0 and B >= 2) else 1
    return 1


def multi_head_attention(x, prepped, *, compute_dtype=None, grid_steps=None,
                         dropout_p=0.0):
    """x: (B, T, C). prepped: output of prepare_params().

    compute_dtype: None -> f32 MXU operands (strict accuracy).
                   jnp.bfloat16 -> bf16 operands for ALL matmuls (QKV proj,
                   per-head attention, output proj); softmax + accumulation
                   stay f32. Recommended on v5e/v6e/v7x when tolerance allows.
    grid_steps:    number of grid steps the batch is split over. Default:
                   1 on single-TC chips, 2 on dual-TC chips (auto-detected).
    """
    # Dropout is identity in eval mode; training-mode dropout not implemented.
    assert dropout_p == 0.0, "TODO(synk): training-mode dropout not implemented"

    B, T, C = x.shape
    H, Hs = prepped["n_head"], prepped["head_size"]
    assert H * Hs == C
    out_dtype = x.dtype

    if grid_steps is None:
        grid_steps = _default_grid_steps(B)
    if grid_steps < 1 or B % grid_steps != 0:
        grid_steps = 1
    G = grid_steps
    Bp = B // G

    wqkv, bqkv, wp, bp = (prepped["wqkv"], prepped["bqkv"],
                          prepped["wp"], prepped["bp"])
    attn_dtype = jnp.float32
    if compute_dtype is not None:
        # Cast only matmul operands; biases stay f32 (added to f32 acc),
        # softmax / accumulation stay f32.
        x = x.astype(compute_dtype)
        wqkv = wqkv.astype(compute_dtype)
        wp = wp.astype(compute_dtype)
        attn_dtype = compute_dtype

    # Free, contiguous reshape: fold the per-step batch into the sublane dim so
    # each grid step sees one lane-dense (Bp*T, C) activation slab.
    xg = x.reshape(G, Bp * T, C)

    kernel = functools.partial(
        _mha_fused_kernel, n_head=H, head_size=Hs, batch_per_step=Bp,
        seq_len=T, inv_sqrt_c=1.0 / math.sqrt(C), attn_dtype=attn_dtype,
        approx_recip=(compute_dtype is not None))

    out = pl.pallas_call(
        kernel,
        out_shape=jax.ShapeDtypeStruct((G, Bp * T, C), out_dtype),
        grid=(G,),
        in_specs=[
            pl.BlockSpec((1, Bp * T, C), lambda g: (g, 0, 0)),   # activations
            pl.BlockSpec((C, 3 * C), lambda g: (0, 0)),          # wqkv (resident)
            pl.BlockSpec((1, 3 * C), lambda g: (0, 0)),          # bqkv (resident)
            pl.BlockSpec((C, C), lambda g: (0, 0)),              # wp (resident)
            pl.BlockSpec((1, C), lambda g: (0, 0)),              # bp (resident)
        ],
        out_specs=pl.BlockSpec((1, Bp * T, C), lambda g: (g, 0, 0)),
        scratch_shapes=[pltpu.VMEM((Bp * T, C), jnp.float32)],   # head outputs
        compiler_params=pltpu.CompilerParams(
            dimension_semantics=("parallel",)),
    )(xg, wqkv, bqkv, wp, bp)

    return out.reshape(B, T, C)


def _reference(x, params):
    """Plain-JAX reference mirroring the PyTorch forward (eval mode)."""
    B, T, C = x.shape
    H, Hs, _ = params["wq"].shape
    outs = []
    tril = jnp.tril(jnp.ones((T, T), dtype=bool))
    for h in range(H):
        q = x @ params["wq"][h].T + params["bq"][h]
        k = x @ params["wk"][h].T + params["bk"][h]
        v = x @ params["wv"][h].T + params["bv"][h]
        w = q @ jnp.swapaxes(k, -2, -1)
        w = jnp.where(tril, w, -jnp.inf) / math.sqrt(C)
        w = jax.nn.softmax(w, axis=-1)
        outs.append(w @ v)
    y = jnp.concatenate(outs, axis=-1)
    return y @ params["wp"].T + params["bp"]


if __name__ == "__main__":
    # Config: n_embd=32, n_head=4, head_size=8, block_size>=seq, dropout=0.0
    B, T, C, H = 2, 8, 32, 4
    Hs = C // H

    key = jax.random.PRNGKey(0)
    ks = jax.random.split(key, 9)
    scale_in = 1.0 / math.sqrt(C)
    params = {
        # PyTorch nn.Linear layout: weight (out_features, in_features)
        "wq": jax.random.uniform(ks[0], (H, Hs, C), jnp.float32, -scale_in, scale_in),
        "bq": jax.random.uniform(ks[1], (H, Hs), jnp.float32, -scale_in, scale_in),
        "wk": jax.random.uniform(ks[2], (H, Hs, C), jnp.float32, -scale_in, scale_in),
        "bk": jax.random.uniform(ks[3], (H, Hs), jnp.float32, -scale_in, scale_in),
        "wv": jax.random.uniform(ks[4], (H, Hs, C), jnp.float32, -scale_in, scale_in),
        "bv": jax.random.uniform(ks[5], (H, Hs), jnp.float32, -scale_in, scale_in),
        "wp": jax.random.uniform(ks[6], (C, C), jnp.float32, -scale_in, scale_in),
        "bp": jax.random.uniform(ks[7], (C,), jnp.float32, -scale_in, scale_in),
    }
    x = jax.random.normal(ks[8], (B, T, C), jnp.float32)

    # One-time parameter prep (weight transpose/fusion done once, not per call).
    prepped = prepare_params(params)
    ref = _reference(x, params)

    # f32 path, auto grid (1 step on v5e/v6e, 2 on v7x): strict accuracy.
    out = multi_head_attention(x, prepped)
    out = jax.block_until_ready(out)
    assert out.shape == (B, T, C)
    assert jnp.allclose(out, ref, atol=1e-4, rtol=1e-4), "f32 mismatch vs reference"

    # Explicit 2-way grid split (the v7x dual-TensorCore path): strict accuracy.
    out_split = multi_head_attention(x, prepped, grid_steps=2)
    out_split = jax.block_until_ready(out_split)
    assert jnp.allclose(out_split, ref, atol=1e-4, rtol=1e-4), \
        "grid_steps=2 mismatch vs reference"

    # bf16 MXU-operand path (all matmuls in bf16; fine on v5e/v6e/v7x): loose check.
    out_bf16 = multi_head_attention(x, prepped, compute_dtype=jnp.bfloat16)
    out_bf16 = jax.block_until_ready(out_bf16)
    assert jnp.allclose(out_bf16, ref, atol=1e-1, rtol=1e-1), "bf16 mismatch vs reference"

    print("KERNEL_OK")
</pallas_src>

<mosaic_0001>
module attributes {stable_mosaic.version = 11 : i64} {
  func.func @_mha_fused_kernel(%arg0: i32, %arg1: memref<1x16x32xf32, #tpu.memory_space<vmem>>, %arg2: memref<32x96xf32, #tpu.memory_space<vmem>>, %arg3: memref<1x96xf32, #tpu.memory_space<vmem>>, %arg4: memref<32x32xf32, #tpu.memory_space<vmem>>, %arg5: memref<1x32xf32, #tpu.memory_space<vmem>>, %arg6: memref<1x16x32xf32, #tpu.memory_space<vmem>>, %arg7: memref<16x32xf32, #tpu.memory_space<vmem>>) attributes {dimension_semantics = [#tpu.dimension_semantics<parallel>], iteration_bounds = array<i64: 1>, scalar_prefetch = 0 : i64, scratch_operands = 1 : i64, tpu.core_type = #tpu.core_type<tc>, window_params = [{transform_indices = @transform_0, window_bounds = array<i64: 1, 16, 32>}, {pipeline_mode = #tpu.pipeline_mode<synchronous>, transform_indices = @transform_1, window_bounds = array<i64: 32, 96>}, {pipeline_mode = #tpu.pipeline_mode<synchronous>, transform_indices = @transform_2, window_bounds = array<i64: 1, 96>}, {pipeline_mode = #tpu.pipeline_mode<synchronous>, transform_indices = @transform_3, window_bounds = array<i64: 32, 32>}, {pipeline_mode = #tpu.pipeline_mode<synchronous>, transform_indices = @transform_4, window_bounds = array<i64: 1, 32>}, {transform_indices = @transform_5, window_bounds = array<i64: 1, 16, 32>}]} {
    %c0 = arith.constant 0 : index
    %c0_0 = arith.constant 0 : index
    %c0_1 = arith.constant 0 : index
    %0 = vector.load %arg1[%c0, %c0_0, %c0_1] : memref<1x16x32xf32, #tpu.memory_space<vmem>>, vector<1x16x32xf32>
    %1 = vector.shape_cast %0 : vector<1x16x32xf32> to vector<16x32xf32>
    %c0_2 = arith.constant 0 : index
    %c0_3 = arith.constant 0 : index
    %2 = vector.load %arg2[%c0_2, %c0_3] : memref<32x96xf32, #tpu.memory_space<vmem>>, vector<32x96xf32>
    %cst = arith.constant dense<0.000000e+00> : vector<16x96xf32>
    %3 = tpu.matmul %1, %2, %cst {dimension_numbers = #tpu.dot_dimension_numbers<[1], [0], [0], [1], [0, 0, 1, 1], [], []>} : vector<16x32xf32>, vector<32x96xf32>, vector<16x96xf32> -> vector<16x96xf32>
    %c0_4 = arith.constant 0 : index
    %c0_5 = arith.constant 0 : index
    %4 = vector.load %arg3[%c0_4, %c0_5] : memref<1x96xf32, #tpu.memory_space<vmem>>, vector<1x96xf32>
    %5 = vector.broadcast %4 : vector<1x96xf32> to vector<16x96xf32>
    %6 = arith.addf %3, %5 : vector<16x96xf32>
    %7 = vector.extract_strided_slice %6 {offsets = [0, 0], sizes = [16, 32], strides = [1, 1]} : vector<16x96xf32> to vector<16x32xf32>
    %cst_6 = arith.constant 0.176776692 : f32
    %8 = vector.broadcast %cst_6 : f32 to vector<16x32xf32>
    %9 = arith.mulf %7, %8 : vector<16x32xf32>
    %10 = vector.extract_strided_slice %6 {offsets = [0, 32], sizes = [16, 32], strides = [1, 1]} : vector<16x96xf32> to vector<16x32xf32>
    %11 = vector.extract_strided_slice %6 {offsets = [0, 64], sizes = [16, 32], strides = [1, 1]} : vector<16x96xf32> to vector<16x32xf32>
    %12 = tpu.iota {dimensions = array<i32: 0>} : vector<8x8xi32>
    %13 = tpu.iota {dimensions = array<i32: 1>} : vector<8x8xi32>
    %14 = arith.cmpi sge, %12, %13 : vector<8x8xi32>
    %cst_7 = arith.constant 0.000000e+00 : f32
    %cst_8 = arith.constant 0xFF800000 : f32
    %15 = vector.broadcast %cst_7 : f32 to vector<8x8xf32>
    %16 = vector.broadcast %cst_8 : f32 to vector<8x8xf32>
    %17 = arith.select %14, %15, %16 : vector<8x8xi1>, vector<8x8xf32>
    %18 = vector.extract_strided_slice %9 {offsets = [0, 0], sizes = [8, 32], strides = [1, 1]} : vector<16x32xf32> to vector<8x32xf32>
    %19 = vector.extract_strided_slice %10 {offsets = [0, 0], sizes = [8, 32], strides = [1, 1]} : vector<16x32xf32> to vector<8x32xf32>
    %20 = vector.extract_strided_slice %11 {offsets = [0, 0], sizes = [8, 32], strides = [1, 1]} : vector<16x32xf32> to vector<8x32xf32>
    %21 = vector.extract_strided_slice %18 {offsets = [0, 0], sizes = [8, 8], strides = [1, 1]} : vector<8x32xf32> to vector<8x8xf32>
    %22 = vector.extract_strided_slice %19 {offsets = [0, 0], sizes = [8, 8], strides = [1, 1]} : vector<8x32xf32> to vector<8x8xf32>
    %23 = vector.extract_strided_slice %20 {offsets = [0, 0], sizes = [8, 8], strides = [1, 1]} : vector<8x32xf32> to vector<8x8xf32>
    %cst_9 = arith.constant dense<0.000000e+00> : vector<8x8xf32>
    %24 = tpu.matmul %21, %22, %cst_9 {dimension_numbers = #tpu.dot_dimension_numbers<[1], [1], [0], [0], [0, 0, 1, 0], [], []>} : vector<8x8xf32>, vector<8x8xf32>, vector<8x8xf32> -> vector<8x8xf32>
    %25 = arith.addf %24, %17 : vector<8x8xf32>
    %cst_10 = arith.constant dense<0xFF800000> : vector<8xf32>
    %26 = vector.multi_reduction <maximumf>, %25, %cst_10 [1] : vector<8x8xf32> to vector<8xf32>
    %27 = vector.shape_cast %26 : vector<8xf32> to vector<8x1xf32>
    %28 = vector.broadcast %27 : vector<8x1xf32> to vector<8x8xf32>
    %29 = arith.subf %25, %28 : vector<8x8xf32>
    %30 = math.exp %29 : vector<8x8xf32>
    %cst_11 = arith.constant dense<0.000000e+00> : vector<8xf32>
    %31 = vector.multi_reduction <add>, %30, %cst_11 [1] : vector<8x8xf32> to vector<8xf32>
    %32 = vector.shape_cast %31 : vector<8xf32> to vector<8x1xf32>
    %33 = tpu.reciprocal %32 : vector<8x1xf32> -> vector<8x1xf32>
    %34 = vector.broadcast %33 : vector<8x1xf32> to vector<8x8xf32>
    %35 = arith.mulf %30, %34 : vector<8x8xf32>
    %cst_12 = arith.constant dense<0.000000e+00> : vector<8x8xf32>
    %36 = tpu.matmul %35, %23, %cst_12 {dimension_numbers = #tpu.dot_dimension_numbers<[1], [0], [0], [1], [0, 0, 1, 1], [], []>} : vector<8x8xf32>, vector<8x8xf32>, vector<8x8xf32> -> vector<8x8xf32>
    %c0_13 = arith.constant 0 : index
    %c0_14 = arith.constant 0 : index
    %37 = vector.load %arg7[%c0_13, %c0_14] : memref<16x32xf32, #tpu.memory_space<vmem>>, vector<8x8xf32>
    tpu.vector_store %arg7[%c0_13, %c0_14], %36 {strides = array<i32>} : memref<16x32xf32, #tpu.memory_space<vmem>>, vector<8x8xf32>,
    %38 = vector.extract_strided_slice %18 {offsets = [0, 8], sizes = [8, 8], strides = [1, 1]} : vector<8x32xf32> to vector<8x8xf32>
    %39 = vector.extract_strided_slice %19 {offsets = [0, 8], sizes = [8, 8], strides = [1, 1]} : vector<8x32xf32> to vector<8x8xf32>
    %40 = vector.extract_strided_slice %20 {offsets = [0, 8], sizes = [8, 8], strides = [1, 1]} : vector<8x32xf32> to vector<8x8xf32>
    %cst_15 = arith.constant dense<0.000000e+00> : vector<8x8xf32>
    %41 = tpu.matmul %38, %39, %cst_15 {dimension_numbers = #tpu.dot_dimension_numbers<[1], [1], [0], [0], [0, 0, 1, 0], [], []>} : vector<8x8xf32>, vector<8x8xf32>, vector<8x8xf32> -> vector<8x8xf32>
    %42 = arith.addf %41, %17 : vector<8x8xf32>
    %cst_16 = arith.constant dense<0xFF800000> : vector<8xf32>
    %43 = vector.multi_reduction <maximumf>, %42, %cst_16 [1] : vector<8x8xf32> to vector<8xf32>
    %44 = vector.shape_cast %43 : vector<8xf32> to vector<8x1xf32>
    %45 = vector.broadcast %44 : vector<8x1xf32> to vector<8x8xf32>
    %46 = arith.subf %42, %45 : vector<8x8xf32>
    %47 = math.exp %46 : vector<8x8xf32>
    %cst_17 = arith.constant dense<0.000000e+00> : vector<8xf32>
    %48 = vector.multi_reduction <add>, %47, %cst_17 [1] : vector<8x8xf32> to vector<8xf32>
    %49 = vector.shape_cast %48 : vector<8xf32> to vector<8x1xf32>
    %50 = tpu.reciprocal %49 : vector<8x1xf32> -> vector<8x1xf32>
    %51 = vector.broadcast %50 : vector<8x1xf32> to vector<8x8xf32>
    %52 = arith.mulf %47, %51 : vector<8x8xf32>
    %cst_18 = arith.constant dense<0.000000e+00> : vector<8x8xf32>
    %53 = tpu.matmul %52, %40, %cst_18 {dimension_numbers = #tpu.dot_dimension_numbers<[1], [0], [0], [1], [0, 0, 1, 1], [], []>} : vector<8x8xf32>, vector<8x8xf32>, vector<8x8xf32> -> vector<8x8xf32>
    %c0_19 = arith.constant 0 : index
    %c8 = arith.constant 8 : index
    %54 = vector.load %arg7[%c0_19, %c8] : memref<16x32xf32, #tpu.memory_space<vmem>>, vector<8x8xf32>
    tpu.vector_store %arg7[%c0_19, %c8], %53 {strides = array<i32>} : memref<16x32xf32, #tpu.memory_space<vmem>>, vector<8x8xf32>,
    %55 = vector.extract_strided_slice %18 {offsets = [0, 16], sizes = [8, 8], strides = [1, 1]} : vector<8x32xf32> to vector<8x8xf32>
    %56 = vector.extract_strided_slice %19 {offsets = [0, 16], sizes = [8, 8], strides = [1, 1]} : vector<8x32xf32> to vector<8x8xf32>
    %57 = vector.extract_strided_slice %20 {offsets = [0, 16], sizes = [8, 8], strides = [1, 1]} : vector<8x32xf32> to vector<8x8xf32>
    %cst_20 = arith.constant dense<0.000000e+00> : vector<8x8xf32>
    %58 = tpu.matmul %55, %56, %cst_20 {dimension_numbers = #tpu.dot_dimension_numbers<[1], [1], [0], [0], [0, 0, 1, 0], [], []>} : vector<8x8xf32>, vector<8x8xf32>, vector<8x8xf32> -> vector<8x8xf32>
    %59 = arith.addf %58, %17 : vector<8x8xf32>
    %cst_21 = arith.constant dense<0xFF800000> : vector<8xf32>
    %60 = vector.multi_reduction <maximumf>, %59, %cst_21 [1] : vector<8x8xf32> to vector<8xf32>
    %61 = vector.shape_cast %60 : vector<8xf32> to vector<8x1xf32>
    %62 = vector.broadcast %61 : vector<8x1xf32> to vector<8x8xf32>
    %63 = arith.subf %59, %62 : vector<8x8xf32>
    %64 = math.exp %63 : vector<8x8xf32>
    %cst_22 = arith.constant dense<0.000000e+00> : vector<8xf32>
    %65 = vector.multi_reduction <add>, %64, %cst_22 [1] : vector<8x8xf32> to vector<8xf32>
    %66 = vector.shape_cast %65 : vector<8xf32> to vector<8x1xf32>
    %67 = tpu.reciprocal %66 : vector<8x1xf32> -> vector<8x1xf32>
    %68 = vector.broadcast %67 : vector<8x1xf32> to vector<8x8xf32>
    %69 = arith.mulf %64, %68 : vector<8x8xf32>
    %cst_23 = arith.constant dense<0.000000e+00> : vector<8x8xf32>
    %70 = tpu.matmul %69, %57, %cst_23 {dimension_numbers = #tpu.dot_dimension_numbers<[1], [0], [0], [1], [0, 0, 1, 1], [], []>} : vector<8x8xf32>, vector<8x8xf32>, vector<8x8xf32> -> vector<8x8xf32>
    %c0_24 = arith.constant 0 : index
    %c16 = arith.constant 16 : index
    %71 = vector.load %arg7[%c0_24, %c16] : memref<16x32xf32, #tpu.memory_space<vmem>>, vector<8x8xf32>
    tpu.vector_store %arg7[%c0_24, %c16], %70 {strides = array<i32>} : memref<16x32xf32, #tpu.memory_space<vmem>>, vector<8x8xf32>,
    %72 = vector.extract_strided_slice %18 {offsets = [0, 24], sizes = [8, 8], strides = [1, 1]} : vector<8x32xf32> to vector<8x8xf32>
    %73 = vector.extract_strided_slice %19 {offsets = [0, 24], sizes = [8, 8], strides = [1, 1]} : vector<8x32xf32> to vector<8x8xf32>
    %74 = vector.extract_strided_slice %20 {offsets = [0, 24], sizes = [8, 8], strides = [1, 1]} : vector<8x32xf32> to vector<8x8xf32>
    %cst_25 = arith.constant dense<0.000000e+00> : vector<8x8xf32>
    %75 = tpu.matmul %72, %73, %cst_25 {dimension_numbers = #tpu.dot_dimension_numbers<[1], [1], [0], [0], [0, 0, 1, 0], [], []>} : vector<8x8xf32>, vector<8x8xf32>, vector<8x8xf32> -> vector<8x8xf32>
    %76 = arith.addf %75, %17 : vector<8x8xf32>
    %cst_26 = arith.constant dense<0xFF800000> : vector<8xf32>
    %77 = vector.multi_reduction <maximumf>, %76, %cst_26 [1] : vector<8x8xf32> to vector<8xf32>
    %78 = vector.shape_cast %77 : vector<8xf32> to vector<8x1xf32>
    %79 = vector.broadcast %78 : vector<8x1xf32> to vector<8x8xf32>
    %80 = arith.subf %76, %79 : vector<8x8xf32>
    %81 = math.exp %80 : vector<8x8xf32>
    %cst_27 = arith.constant dense<0.000000e+00> : vector<8xf32>
    %82 = vector.multi_reduction <add>, %81, %cst_27 [1] : vector<8x8xf32> to vector<8xf32>
    %83 = vector.shape_cast %82 : vector<8xf32> to vector<8x1xf32>
    %84 = tpu.reciprocal %83 : vector<8x1xf32> -> vector<8x1xf32>
    %85 = vector.broadcast %84 : vector<8x1xf32> to vector<8x8xf32>
    %86 = arith.mulf %81, %85 : vector<8x8xf32>
    %cst_28 = arith.constant dense<0.000000e+00> : vector<8x8xf32>
    %87 = tpu.matmul %86, %74, %cst_28 {dimension_numbers = #tpu.dot_dimension_numbers<[1], [0], [0], [1], [0, 0, 1, 1], [], []>} : vector<8x8xf32>, vector<8x8xf32>, vector<8x8xf32> -> vector<8x8xf32>
    %c0_29 = arith.constant 0 : index
    %c24 = arith.constant 24 : index
    %88 = vector.load %arg7[%c0_29, %c24] : memref<16x32xf32, #tpu.memory_space<vmem>>, vector<8x8xf32>
    tpu.vector_store %arg7[%c0_29, %c24], %87 {strides = array<i32>} : memref<16x32xf32, #tpu.memory_space<vmem>>, vector<8x8xf32>,
    %89 = vector.extract_strided_slice %9 {offsets = [8, 0], sizes = [8, 32], strides = [1, 1]} : vector<16x32xf32> to vector<8x32xf32>
    %90 = vector.extract_strided_slice %10 {offsets = [8, 0], sizes = [8, 32], strides = [1, 1]} : vector<16x32xf32> to vector<8x32xf32>
    %91 = vector.extract_strided_slice %11 {offsets = [8, 0], sizes = [8, 32], strides = [1, 1]} : vector<16x32xf32> to vector<8x32xf32>
    %92 = vector.extract_strided_slice %89 {offsets = [0, 0], sizes = [8, 8], strides = [1, 1]} : vector<8x32xf32> to vector<8x8xf32>
    %93 = vector.extract_strided_slice %90 {offsets = [0, 0], sizes = [8, 8], strides = [1, 1]} : vector<8x32xf32> to vector<8x8xf32>
    %94 = vector.extract_strided_slice %91 {offsets = [0, 0], sizes = [8, 8], strides = [1, 1]} : vector<8x32xf32> to vector<8x8xf32>
    %cst_30 = arith.constant dense<0.000000e+00> : vector<8x8xf32>
    %95 = tpu.matmul %92, %93, %cst_30 {dimension_numbers = #tpu.dot_dimension_numbers<[1], [1], [0], [0], [0, 0, 1, 0], [], []>} : vector<8x8xf32>, vector<8x8xf32>, vector<8x8xf32> -> vector<8x8xf32>
    %96 = arith.addf %95, %17 : vector<8x8xf32>
    %cst_31 = arith.constant dense<0xFF800000> : vector<8xf32>
    %97 = vector.multi_reduction <maximumf>, %96, %cst_31 [1] : vector<8x8xf32> to vector<8xf32>
    %98 = vector.shape_cast %97 : vector<8xf32> to vector<8x1xf32>
    %99 = vector.broadcast %98 : vector<8x1xf32> to vector<8x8xf32>
    %100 = arith.subf %96, %99 : vector<8x8xf32>
    %101 = math.exp %100 : vector<8x8xf32>
    %cst_32 = arith.constant dense<0.000000e+00> : vector<8xf32>
    %102 = vector.multi_reduction <add>, %101, %cst_32 [1] : vector<8x8xf32> to vector<8xf32>
    %103 = vector.shape_cast %102 : vector<8xf32> to vector<8x1xf32>
    %104 = tpu.reciprocal %103 : vector<8x1xf32> -> vector<8x1xf32>
    %105 = vector.broadcast %104 : vector<8x1xf32> to vector<8x8xf32>
    %106 = arith.mulf %101, %105 : vector<8x8xf32>
    %cst_33 = arith.constant dense<0.000000e+00> : vector<8x8xf32>
    %107 = tpu.matmul %106, %94, %cst_33 {dimension_numbers = #tpu.dot_dimension_numbers<[1], [0], [0], [1], [0, 0, 1, 1], [], []>} : vector<8x8xf32>, vector<8x8xf32>, vector<8x8xf32> -> vector<8x8xf32>
    %c8_34 = arith.constant 8 : index
    %c0_35 = arith.constant 0 : index
    %108 = vector.load %arg7[%c8_34, %c0_35] : memref<16x32xf32, #tpu.memory_space<vmem>>, vector<8x8xf32>
    tpu.vector_store %arg7[%c8_34, %c0_35], %107 {strides = array<i32>} : memref<16x32xf32, #tpu.memory_space<vmem>>, vector<8x8xf32>,
    %109 = vector.extract_strided_slice %89 {offsets = [0, 8], sizes = [8, 8], strides = [1, 1]} : vector<8x32xf32> to vector<8x8xf32>
    %110 = vector.extract_strided_slice %90 {offsets = [0, 8], sizes = [8, 8], strides = [1, 1]} : vector<8x32xf32> to vector<8x8xf32>
    %111 = vector.extract_strided_slice %91 {offsets = [0, 8], sizes = [8, 8], strides = [1, 1]} : vector<8x32xf32> to vector<8x8xf32>
    %cst_36 = arith.constant dense<0.000000e+00> : vector<8x8xf32>
    %112 = tpu.matmul %109, %110, %cst_36 {dimension_numbers = #tpu.dot_dimension_numbers<[1], [1], [0], [0], [0, 0, 1, 0], [], []>} : vector<8x8xf32>, vector<8x8xf32>, vector<8x8xf32> -> vector<8x8xf32>
    %113 = arith.addf %112, %17 : vector<8x8xf32>
    %cst_37 = arith.constant dense<0xFF800000> : vector<8xf32>
    %114 = vector.multi_reduction <maximumf>, %113, %cst_37 [1] : vector<8x8xf32> to vector<8xf32>
    %115 = vector.shape_cast %114 : vector<8xf32> to vector<8x1xf32>
    %116 = vector.broadcast %115 : vector<8x1xf32> to vector<8x8xf32>
    %117 = arith.subf %113, %116 : vector<8x8xf32>
    %118 = math.exp %117 : vector<8x8xf32>
    %cst_38 = arith.constant dense<0.000000e+00> : vector<8xf32>
    %119 = vector.multi_reduction <add>, %118, %cst_38 [1] : vector<8x8xf32> to vector<8xf32>
    %120 = vector.shape_cast %119 : vector<8xf32> to vector<8x1xf32>
    %121 = tpu.reciprocal %120 : vector<8x1xf32> -> vector<8x1xf32>
    %122 = vector.broadcast %121 : vector<8x1xf32> to vector<8x8xf32>
    %123 = arith.mulf %118, %122 : vector<8x8xf32>
    %cst_39 = arith.constant dense<0.000000e+00> : vector<8x8xf32>
    %124 = tpu.matmul %123, %111, %cst_39 {dimension_numbers = #tpu.dot_dimension_numbers<[1], [0], [0], [1], [0, 0, 1, 1], [], []>} : vector<8x8xf32>, vector<8x8xf32>, vector<8x8xf32> -> vector<8x8xf32>
    %c8_40 = arith.constant 8 : index
    %c8_41 = arith.constant 8 : index
    %125 = vector.load %arg7[%c8_40, %c8_41] : memref<16x32xf32, #tpu.memory_space<vmem>>, vector<8x8xf32>
    tpu.vector_store %arg7[%c8_40, %c8_41], %124 {strides = array<i32>} : memref<16x32xf32, #tpu.memory_space<vmem>>, vector<8x8xf32>,
    %126 = vector.extract_strided_slice %89 {offsets = [0, 16], sizes = [8, 8], strides = [1, 1]} : vector<8x32xf32> to vector<8x8xf32>
    %127 = vector.extract_strided_slice %90 {offsets = [0, 16], sizes = [8, 8], strides = [1, 1]} : vector<8x32xf32> to vector<8x8xf32>
    %128 = vector.extract_strided_slice %91 {offsets = [0, 16], sizes = [8, 8], strides = [1, 1]} : vector<8x32xf32> to vector<8x8xf32>
    %cst_42 = arith.constant dense<0.000000e+00> : vector<8x8xf32>
    %129 = tpu.matmul %126, %127, %cst_42 {dimension_numbers = #tpu.dot_dimension_numbers<[1], [1], [0], [0], [0, 0, 1, 0], [], []>} : vector<8x8xf32>, vector<8x8xf32>, vector<8x8xf32> -> vector<8x8xf32>
    %130 = arith.addf %129, %17 : vector<8x8xf32>
    %cst_43 = arith.constant dense<0xFF800000> : vector<8xf32>
    %131 = vector.multi_reduction <maximumf>, %130, %cst_43 [1] : vector<8x8xf32> to vector<8xf32>
    %132 = vector.shape_cast %131 : vector<8xf32> to vector<8x1xf32>
    %133 = vector.broadcast %132 : vector<8x1xf32> to vector<8x8xf32>
    %134 = arith.subf %130, %133 : vector<8x8xf32>
    %135 = math.exp %134 : vector<8x8xf32>
    %cst_44 = arith.constant dense<0.000000e+00> : vector<8xf32>
    %136 = vector.multi_reduction <add>, %135, %cst_44 [1] : vector<8x8xf32> to vector<8xf32>
    %137 = vector.shape_cast %136 : vector<8xf32> to vector<8x1xf32>
    %138 = tpu.reciprocal %137 : vector<8x1xf32> -> vector<8x1xf32>
    %139 = vector.broadcast %138 : vector<8x1xf32> to vector<8x8xf32>
    %140 = arith.mulf %135, %139 : vector<8x8xf32>
    %cst_45 = arith.constant dense<0.000000e+00> : vector<8x8xf32>
    %141 = tpu.matmul %140, %128, %cst_45 {dimension_numbers = #tpu.dot_dimension_numbers<[1], [0], [0], [1], [0, 0, 1, 1], [], []>} : vector<8x8xf32>, vector<8x8xf32>, vector<8x8xf32> -> vector<8x8xf32>
    %c8_46 = arith.constant 8 : index
    %c16_47 = arith.constant 16 : index
    %142 = vector.load %arg7[%c8_46, %c16_47] : memref<16x32xf32, #tpu.memory_space<vmem>>, vector<8x8xf32>
    tpu.vector_store %arg7[%c8_46, %c16_47], %141 {strides = array<i32>} : memref<16x32xf32, #tpu.memory_space<vmem>>, vector<8x8xf32>,
    %143 = vector.extract_strided_slice %89 {offsets = [0, 24], sizes = [8, 8], strides = [1, 1]} : vector<8x32xf32> to vector<8x8xf32>
    %144 = vector.extract_strided_slice %90 {offsets = [0, 24], sizes = [8, 8], strides = [1, 1]} : vector<8x32xf32> to vector<8x8xf32>
    %145 = vector.extract_strided_slice %91 {offsets = [0, 24], sizes = [8, 8], strides = [1, 1]} : vector<8x32xf32> to vector<8x8xf32>
    %cst_48 = arith.constant dense<0.000000e+00> : vector<8x8xf32>
    %146 = tpu.matmul %143, %144, %cst_48 {dimension_numbers = #tpu.dot_dimension_numbers<[1], [1], [0], [0], [0, 0, 1, 0], [], []>} : vector<8x8xf32>, vector<8x8xf32>, vector<8x8xf32> -> vector<8x8xf32>
    %147 = arith.addf %146, %17 : vector<8x8xf32>
    %cst_49 = arith.constant dense<0xFF800000> : vector<8xf32>
    %148 = vector.multi_reduction <maximumf>, %147, %cst_49 [1] : vector<8x8xf32> to vector<8xf32>
    %149 = vector.shape_cast %148 : vector<8xf32> to vector<8x1xf32>
    %150 = vector.broadcast %149 : vector<8x1xf32> to vector<8x8xf32>
    %151 = arith.subf %147, %150 : vector<8x8xf32>
    %152 = math.exp %151 : vector<8x8xf32>
    %cst_50 = arith.constant dense<0.000000e+00> : vector<8xf32>
    %153 = vector.multi_reduction <add>, %152, %cst_50 [1] : vector<8x8xf32> to vector<8xf32>
    %154 = vector.shape_cast %153 : vector<8xf32> to vector<8x1xf32>
    %155 = tpu.reciprocal %154 : vector<8x1xf32> -> vector<8x1xf32>
    %156 = vector.broadcast %155 : vector<8x1xf32> to vector<8x8xf32>
    %157 = arith.mulf %152, %156 : vector<8x8xf32>
    %cst_51 = arith.constant dense<0.000000e+00> : vector<8x8xf32>
    %158 = tpu.matmul %157, %145, %cst_51 {dimension_numbers = #tpu.dot_dimension_numbers<[1], [0], [0], [1], [0, 0, 1, 1], [], []>} : vector<8x8xf32>, vector<8x8xf32>, vector<8x8xf32> -> vector<8x8xf32>
    %c8_52 = arith.constant 8 : index
    %c24_53 = arith.constant 24 : index
    %159 = vector.load %arg7[%c8_52, %c24_53] : memref<16x32xf32, #tpu.memory_space<vmem>>, vector<8x8xf32>
    tpu.vector_store %arg7[%c8_52, %c24_53], %158 {strides = array<i32>} : memref<16x32xf32, #tpu.memory_space<vmem>>, vector<8x8xf32>,
    %c0_54 = arith.constant 0 : index
    %c0_55 = arith.constant 0 : index
    %160 = vector.load %arg7[%c0_54, %c0_55] : memref<16x32xf32, #tpu.memory_space<vmem>>, vector<16x32xf32>
    %c0_56 = arith.constant 0 : index
    %c0_57 = arith.constant 0 : index
    %161 = vector.load %arg4[%c0_56, %c0_57] : memref<32x32xf32, #tpu.memory_space<vmem>>, vector<32x32xf32>
    %cst_58 = arith.constant dense<0.000000e+00> : vector<16x32xf32>
    %162 = tpu.matmul %160, %161, %cst_58 {dimension_numbers = #tpu.dot_dimension_numbers<[1], [0], [0], [1], [0, 0, 1, 1], [], []>} : vector<16x32xf32>, vector<32x32xf32>, vector<16x32xf32> -> vector<16x32xf32>
    %c0_59 = arith.constant 0 : index
    %c0_60 = arith.constant 0 : index
    %163 = vector.load %arg5[%c0_59, %c0_60] : memref<1x32xf32, #tpu.memory_space<vmem>>, vector<1x32xf32>
    %164 = vector.broadcast %163 : vector<1x32xf32> to vector<16x32xf32>
    %165 = arith.addf %162, %164 : vector<16x32xf32>
    %c0_61 = arith.constant 0 : index
    %c0_62 = arith.constant 0 : index
    %c0_63 = arith.constant 0 : index
    %166 = vector.load %arg6[%c0_61, %c0_62, %c0_63] : memref<1x16x32xf32, #tpu.memory_space<vmem>>, vector<1x16x32xf32>
    %167 = vector.shape_cast %166 : vector<1x16x32xf32> to vector<16x32xf32>
    %168 = vector.shape_cast %165 : vector<16x32xf32> to vector<1x16x32xf32>
    tpu.vector_store %arg6[%c0_61, %c0_62, %c0_63], %168 {strides = array<i32>} : memref<1x16x32xf32, #tpu.memory_space<vmem>>, vector<1x16x32xf32>,
    return
  }
  func.func @transform_0(%arg0: i32) -> (i32, i32, i32) {
    %c0_i32 = arith.constant 0 : i32
    %c0_i32_0 = arith.constant 0 : i32
    %c0_i32_1 = arith.constant 0 : i32
    return %arg0, %c0_i32, %c0_i32_0 : i32, i32, i32
  }
  func.func @transform_1(%arg0: i32) -> (i32, i32) {
    %c0_i32 = arith.constant 0 : i32
    %c0_i32_0 = arith.constant 0 : i32
    %c0_i32_1 = arith.constant 0 : i32
    return %c0_i32, %c0_i32_0 : i32, i32
  }
  func.func @transform_2(%arg0: i32) -> (i32, i32) {
    %c0_i32 = arith.constant 0 : i32
    %c0_i32_0 = arith.constant 0 : i32
    %c0_i32_1 = arith.constant 0 : i32
    return %c0_i32, %c0_i32_0 : i32, i32
  }
  func.func @transform_3(%arg0: i32) -> (i32, i32) {
    %c0_i32 = arith.constant 0 : i32
    %c0_i32_0 = arith.constant 0 : i32
    %c0_i32_1 = arith.constant 0 : i32
    return %c0_i32, %c0_i32_0 : i32, i32
  }
  func.func @transform_4(%arg0: i32) -> (i32, i32) {
    %c0_i32 = arith.constant 0 : i32
    %c0_i32_0 = arith.constant 0 : i32
    %c0_i32_1 = arith.constant 0 : i32
    return %c0_i32, %c0_i32_0 : i32, i32
  }
  func.func @transform_5(%arg0: i32) -> (i32, i32, i32) {
    %c0_i32 = arith.constant 0 : i32
    %c0_i32_0 = arith.constant 0 : i32
    %c0_i32_1 = arith.constant 0 : i32
    return %arg0, %c0_i32, %c0_i32_0 : i32, i32, i32
  }
}

</mosaic_0001>

<llo_original>
// kernel: tpu_custom_call.1
$region0: #{tpu_custom_call.1}
  #allocation0 [shape = 'u32[]', space=smem, size = 0x4, offset = 0x4, fixed_abs, tag = 'smem constant byte address 0x4 - core index']
  #allocation1 [shape = 'u32[144,128]{1,0:T(1,128)}', space=vmem, size = 0x12000, scoped, tag = 'internal scratch']
  #allocation2 [shape = 'f32[16,32]{1,0:T(8,128)}', space=vmem, size = 0x2000, scoped, tag = 'scratch operand']
  %s0 = inlined_call_operand.hbm [shape: f32[1,16,32], index: 0, kind: input, shape index: {}]
  %s1 = inlined_call_operand.hbm [shape: f32[32,96], index: 1, kind: input, shape index: {}]
  %s2 = inlined_call_operand.vmem [shape: f32[1,96], index: 2, kind: input, shape index: {}]
  %s3 = inlined_call_operand.hbm [shape: f32[32,32], index: 3, kind: input, shape index: {}]
  %s4 = inlined_call_operand.vmem [shape: f32[1,32], index: 4, kind: input, shape index: {}]
  %s5 = inlined_call_operand.hbm [shape: f32[1,16,32], index: 5, kind: output, shape index: {}]
  %s6 = sld [smem:[#allocation0]]
  $region42: #{tpu_custom_call.1} parent=0
    _
  %s8 = ssub.s32 1, %s6
  %s9 = scalar_select 0, %s8, %s6
  $region1: #{tpu_custom_call.1} parent=0
    #allocation3 [shape = 'u8[8192]{0}', space=vmem, size = 0x2000, scoped, tag = 'input window, operand 0, single buffered']
    #allocation4 [shape = 's32[1]{0}', space=sflag, size = 0x4, scoped, tag = 'scoped memory for tpu_custom_call.1']
    #allocation5 [shape = 's32[1]{0}', space=sflag, size = 0x4, scoped, tag = 'scoped memory for tpu_custom_call.1']
    #allocation6 [shape = 'u8[16384]{0}', space=vmem, size = 0x4000, scoped, tag = 'input window, operand 1, single buffered']
    #allocation7 [shape = 's32[1]{0}', space=sflag, size = 0x4, scoped, tag = 'scoped memory for tpu_custom_call.1']
    #allocation8 [shape = 'u8[16384]{0}', space=vmem, size = 0x4000, scoped, tag = 'input window, operand 3, single buffered']
    #allocation9 [shape = 'u8[8192]{0}', space=vmem, size = 0x2000, scoped, tag = 'output window, operand 0, single buffered']
    %10 = vsyncpa [#allocation4], 0
    %11 = vsyncpa [#allocation7], 0
    %12 = vsyncpa [#allocation5], 0
    // Predicated region
    $region2: #{tpu_custom_call.1} parent=1 // pred_check
      _
    $region3: #{tpu_custom_call.1} parent=1 // pred_check_branch
      %14 = sbr.rel (0) target = $region5
    $region4: #{tpu_custom_call.1} parent=1 // pred_region
      %s16 = ssub.s32 256, 256
      %17 = vsyncadd [#allocation4], %s16
      %s18 = sshll.u32 [#allocation3], 4
      %s19 = int_to_ptr.vmem [resolvable:$true] %s18
      %24 = dma.hbm_to_vmem [thread:$0]  %s0, 256, %s19, [#allocation4], 128, 128, 8
    $region5: #{tpu_custom_call.1} parent=1 // pred_fallthru
      _
    // Predicated region
    $region6: #{tpu_custom_call.1} parent=1 // pred_check
      _
    $region7: #{tpu_custom_call.1} parent=1 // pred_check_branch
      %26 = sbr.rel (0) target = $region9
    $region8: #{tpu_custom_call.1} parent=1 // pred_region
      %s28 = ssub.s32 512, 512
      %29 = vsyncadd [#allocation7], %s28
      %s30 = sshll.u32 [#allocation6], 4
      %s31 = int_to_ptr.vmem [resolvable:$true] %s30
      %36 = dma.hbm_to_vmem [thread:$0]  %s1, 512, %s31, [#allocation7], 128, 128, 8
    $region9: #{tpu_custom_call.1} parent=1 // pred_fallthru
      _
    // Predicated region
    $region10: #{tpu_custom_call.1} parent=1 // pred_check
      _
    $region11: #{tpu_custom_call.1} parent=1 // pred_check_branch
      %38 = sbr.rel (0) target = $region13
    $region12: #{tpu_custom_call.1} parent=1 // pred_region
      _
    $region13: #{tpu_custom_call.1} parent=1 // pred_fallthru
      _
    // Predicated region
    $region14: #{tpu_custom_call.1} parent=1 // pred_check
      _
    $region15: #{tpu_custom_call.1} parent=1 // pred_check_branch
      %40 = sbr.rel (0) target = $region17
    $region16: #{tpu_custom_call.1} parent=1 // pred_region
      %s42 = ssub.s32 512, 512
      %43 = vsyncadd [#allocation7], %s42
      %s44 = sshll.u32 [#allocation8], 4
      %s45 = int_to_ptr.vmem [resolvable:$true] %s44
      %50 = dma.hbm_to_vmem [thread:$0]  %s3, 512, %s45, [#allocation7], 128, 128, 8
    $region17: #{tpu_custom_call.1} parent=1 // pred_fallthru
      _
    // Predicated region
    $region18: #{tpu_custom_call.1} parent=1 // pred_check
      _
    $region19: #{tpu_custom_call.1} parent=1 // pred_check_branch
      %52 = sbr.rel (0) target = $region21
    $region20: #{tpu_custom_call.1} parent=1 // pred_region
      _
    $region21: #{tpu_custom_call.1} parent=1 // pred_fallthru
      _
    // Predicated region
    $region22: #{tpu_custom_call.1} parent=1 // pred_check
      _
    $region23: #{tpu_custom_call.1} parent=1 // pred_check_branch
      %54 = sbr.rel (0) target = $region25
    $region24: #{tpu_custom_call.1} parent=1 // pred_region
      %55 = dma.done [#allocation4], 256
    $region25: #{tpu_custom_call.1} parent=1 // pred_fallthru
      _
    // Predicated region
    $region26: #{tpu_custom_call.1} parent=1 // pred_check
      _
    $region27: #{tpu_custom_call.1} parent=1 // pred_check_branch
      %57 = sbr.rel (0) target = $region29
    $region28: #{tpu_custom_call.1} parent=1 // pred_region
      %58 = dma.done [#allocation7], 512
    $region29: #{tpu_custom_call.1} parent=1 // pred_fallthru
      _
    // Predicated region
    $region30: #{tpu_custom_call.1} parent=1 // pred_check
      _
    $region31: #{tpu_custom_call.1} parent=1 // pred_check_branch
      %60 = sbr.rel (0) target = $region33
    $region32: #{tpu_custom_call.1} parent=1 // pred_region
      %61 = dma.done [#allocation7], 512
    $region33: #{tpu_custom_call.1} parent=1 // pred_fallthru
      _
    %v62 = vld [vmem:[#allocation3] sm:$0xff]
    %v63 = vld [vmem:[#allocation3 + $0x8] sm:$0xff]
    %v64 = vld [vmem:[#allocation6] sm:$0xff]
    %v65 = vld [vmem:[#allocation6 + $0x8] sm:$0xff]
    %v66 = vld [vmem:[#allocation6 + $0x10] sm:$0xff]
    %v67 = vld [vmem:[#allocation6 + $0x18] sm:$0xff]
    %v68 = vld [vmem:[%s2] sm:$0x1]
    %v70 = vlaneseq
    %v71 = vshrl.u32 %v70, 7
    %v72 = vsub.s32 0, %v71
    %v73 = vrot.slane %v68, %v72
    %vm75 = vcmask 261120
    %v77 = vsel %vm75, %v62, 0
    %v80 = vsel %vm75, %v63, 0
    %82 = vmatprep.subr.mxu0 0.0
    %83 = vmatpush1.msra.mxu0 %v64
    %84 = vmatprep.subr.mxu0 0.0
    %85 = vmatpush1.msra.mxu0 %v65
    %86 = vmatprep.subr.mxu0 0.0
    %87 = vmatpush1.msra.mxu0 %v66
    %88 = vmatprep.subr.mxu0 0.0
    %89 = vmatpush1.msra.mxu0 %v67
    %90 = vmatprep.subr.mxu0 0.0
    %91 = vmatpush1.msra.mxu0 0.0
    %92 = vmatprep.subr.mxu0 0.0
    %93 = vmatpush1.msra.mxu0 0.0
    %94 = vmatprep.subr.mxu0 0.0
    %95 = vmatpush1.msra.mxu0 0.0
    %96 = vmatprep.subr.mxu0 0.0
    %97 = vmatpush1.msra.mxu0 0.0
    %98 = vmatprep.subr.mxu0 0.0
    %99 = vmatpush1.msra.mxu0 0.0
    %100 = vmatprep.subr.mxu0 0.0
    %101 = vmatpush1.msra.mxu0 0.0
    %102 = vmatprep.subr.mxu0 0.0
    %103 = vmatpush1.msra.mxu0 0.0
    %104 = vmatprep.subr.mxu0 0.0
    %105 = vmatpush1.msra.mxu0 0.0
    %106 = vmatprep.subr.mxu0 0.0
    %107 = vmatpush1.msra.mxu0 0.0
    %108 = vmatprep.subr.mxu0 0.0
    %109 = vmatpush1.msra.mxu0 0.0
    %110 = vmatprep.subr.mxu0 0.0
    %111 = vmatpush1.msra.mxu0 0.0
    %112 = vmatprep.subr.mxu0 0.0
    %113 = vmatpush1.msra.mxu0 0.0
    %114 = vmatprep.subr.mxu0 0.0
    %115 = vmatpush1.msra.mxu0 0.0
    %116 = vmatprep.subr.mxu0 0.0
    %117 = vmatpush1.msra.mxu0 0.0
    %118 = vmatprep.subr.mxu0 0.0
    %119 = vmatpush1.msra.mxu0 0.0
    %120 = vmatprep.subr.mxu0 0.0
    %121 = vmatpush1.msra.mxu0 0.0
    %122 = vmatprep.subr.mxu0 0.0
    %123 = vmatpush1.msra.mxu0 0.0
    %124 = vmatprep.subr.mxu0 0.0
    %125 = vmatpush1.msra.mxu0 0.0
    %126 = vmatprep.subr.mxu0 0.0
    %127 = vmatpush1.msra.mxu0 0.0
    %128 = vmatprep.subr.mxu0 0.0
    %129 = vmatpush1.msra.mxu0 0.0
    %130 = vmatprep.subr.mxu0 0.0
    %131 = vmatpush1.msra.mxu0 0.0
    %132 = vmatprep.subr.mxu0 0.0
    %133 = vmatpush1.msra.mxu0 0.0
    %134 = vmatprep.subr.mxu0 0.0
    %135 = vmatpush1.msra.mxu0 0.0
    %136 = vmatprep.subr.mxu0 0.0
    %137 = vmatpush1.msra.mxu0 0.0
    %138 = vmatprep.subr.mxu0 0.0
    %139 = vmatpush1.msra.mxu0 0.0
    %140 = vmatprep.subr.mxu0 0.0
    %141 = vmatpush1.msra.mxu0 0.0
    %142 = vmatprep.subr.mxu0 0.0
    %143 = vmatpush1.msra.mxu0 0.0
    %144 = vmatprep.subr.mxu0 0.0
    %145 = vmatpush1.msra.mxu0 0.0
    %146 = vmatprep.mubr.f32.mxu0 0.0
    %147 = vmatmul.mubr.f32.gmra.mrb[0].mxu0 %v77
    %v148 = vpop.f32.mrb[0].mxu0
    %v149 = vadd.f32 %v73, %v148
    %v150 = vpop.f32.mrb[0].mxu0
    %151 = vmatprep.mubr.f32.mxu0 0.0
    %152 = vmatmul.mubr.f32.gmra.mrb[0].mxu0 %v80
    %v153 = vpop.f32.mrb[0].mxu0
    %v154 = vadd.f32 %v73, %v153
    %v155 = vpop.f32.mrb[0].mxu0
    %156 = vdwg.mxu0
    %v157 = vmul.f32 %v149, 0.17677669
    %v158 = vmul.f32 %v154, 0.17677669
    %v159 = vlaneseq
    %v160 = vshrl.u32 %v159, 7
    %v161 = vlaneseq
    %v162 = vand.u32 %v161, 127
    %vm163 = vcmp.ge.s32.totalorder %v160, %v162
    %v164 = vsel %vm163, 0.0, -inf
    %166 = vrot.lane.b32.xlu0 %v149, 96
    %v167 = vpop.permute.xlu0 %166
    %vm168 = vcmask 64512
    %v170 = vsel %vm168, %v157, 0
    %v172 = vsel %vm168, %v167, 0
    %174 = vmatprep.subr.mxu0 0.0
    %175 = vmatpush1.xpose.msra.mxu0 %v172
    %176 = vmatprep.subr.mxu0 0.0
    %177 = vmatpush1.xpose.msra.mxu0 0.0
    %178 = vmatprep.subr.mxu0 0.0
    %179 = vmatpush1.xpose.msra.mxu0 0.0
    %180 = vmatprep.subr.mxu0 0.0
    %181 = vmatpush1.xpose.msra.mxu0 0.0
    %182 = vmatprep.subr.mxu0 0.0
    %183 = vmatpush1.xpose.msra.mxu0 0.0
    %184 = vmatprep.subr.mxu0 0.0
    %185 = vmatpush1.xpose.msra.mxu0 0.0
    %186 = vmatprep.subr.mxu0 0.0
    %187 = vmatpush1.xpose.msra.mxu0 0.0
    %188 = vmatprep.subr.mxu0 0.0
    %189 = vmatpush1.xpose.msra.mxu0 0.0
    %190 = vmatprep.subr.mxu0 0.0
    %191 = vmatpush1.xpose.msra.mxu0 0.0
    %192 = vmatprep.subr.mxu0 0.0
    %193 = vmatpush1.xpose.msra.mxu0 0.0
    %194 = vmatprep.subr.mxu0 0.0
    %195 = vmatpush1.xpose.msra.mxu0 0.0
    %196 = vmatprep.subr.mxu0 0.0
    %197 = vmatpush1.xpose.msra.mxu0 0.0
    %198 = vmatprep.subr.mxu0 0.0
    %199 = vmatpush1.xpose.msra.mxu0 0.0
    %200 = vmatprep.subr.mxu0 0.0
    %201 = vmatpush1.xpose.msra.mxu0 0.0
    %202 = vmatprep.subr.mxu0 0.0
    %203 = vmatpush1.xpose.msra.mxu0 0.0
    %204 = vmatprep.subr.mxu0 0.0
    %205 = vmatpush1.xpose.msra.mxu0 0.0
    %206 = vmatprep.subr.mxu0 0.0
    %207 = vmatpush1.xpose.msra.mxu0 0.0
    %208 = vmatprep.subr.mxu0 0.0
    %209 = vmatpush1.xpose.msra.mxu0 0.0
    %210 = vmatprep.subr.mxu0 0.0
    %211 = vmatpush1.xpose.msra.mxu0 0.0
    %212 = vmatprep.subr.mxu0 0.0
    %213 = vmatpush1.xpose.msra.mxu0 0.0
    %214 = vmatprep.subr.mxu0 0.0
    %215 = vmatpush1.xpose.msra.mxu0 0.0
    %216 = vmatprep.subr.mxu0 0.0
    %217 = vmatpush1.xpose.msra.mxu0 0.0
    %218 = vmatprep.subr.mxu0 0.0
    %219 = vmatpush1.xpose.msra.mxu0 0.0
    %220 = vmatprep.subr.mxu0 0.0
    %221 = vmatpush1.xpose.msra.mxu0 0.0
    %222 = vmatprep.subr.mxu0 0.0
    %223 = vmatpush1.xpose.msra.mxu0 0.0
    %224 = vmatprep.subr.mxu0 0.0
    %225 = vmatpush1.xpose.msra.mxu0 0.0
    %226 = vmatprep.subr.mxu0 0.0
    %227 = vmatpush1.xpose.msra.mxu0 0.0
    %228 = vmatprep.subr.mxu0 0.0
    %229 = vmatpush1.xpose.msra.mxu0 0.0
    %230 = vmatprep.subr.mxu0 0.0
    %231 = vmatpush1.xpose.msra.mxu0 0.0
    %232 = vmatprep.subr.mxu0 0.0
    %233 = vmatpush1.xpose.msra.mxu0 0.0
    %234 = vmatprep.subr.mxu0 0.0
    %235 = vmatpush1.xpose.msra.mxu0 0.0
    %236 = vmatprep.subr.mxu0 0.0
    %237 = vmatpush1.xpose.msra.mxu0 0.0
    %238 = vmatprep.mubr.f32.mxu0 0.0
    %239 = vmatmul.mubr.f32.gmra.mrb[0].mxu0 %v170
    %v240 = vpop.f32.mrb[0].mxu0
    %v241 = vadd.f32 %v164, %v240
    %v242 = vpop.f32.mrb[0].mxu0
    %243 = vdwg.mxu0
    %v244 = vsel %vm168, %v241, -inf
    %245 = vmax.xlane.f32.xlu0 %v244
    %v246 = vpop.xlane.xlu0 %245
    %v247 = vsub.f32 %v241, %v246
    %v248 = vmul.f32 %v247, 1.442695
    %v249 = vpow.pop %v248
    %v250 = vsel %vm168, %v249, 0.0
    %251 = vadd.xlane.f32.xlu0 %v250
    %v252 = vpop.xlane.xlu0 %251
    %v253 = vrcp.pop %v252
    %v254 = vmul.f32 %v249, %v253
    %255 = vrot.lane.b32.xlu0 %v149, 64
    %v256 = vpop.permute.xlu0 %255
    %v259 = vsel %vm168, %v254, 0
    %261 = vmatprep.subr.mxu0 0.0
    %262 = vmatpush1.msra.mxu0 %v256
    %263 = vmatprep.subr.mxu0 0.0
    %264 = vmatpush1.msra.mxu0 0.0
    %265 = vmatprep.subr.mxu0 0.0
    %266 = vmatpush1.msra.mxu0 0.0
    %267 = vmatprep.subr.mxu0 0.0
    %268 = vmatpush1.msra.mxu0 0.0
    %269 = vmatprep.subr.mxu0 0.0
    %270 = vmatpush1.msra.mxu0 0.0
    %271 = vmatprep.subr.mxu0 0.0
    %272 = vmatpush1.msra.mxu0 0.0
    %273 = vmatprep.subr.mxu0 0.0
    %274 = vmatpush1.msra.mxu0 0.0
    %275 = vmatprep.subr.mxu0 0.0
    %276 = vmatpush1.msra.mxu0 0.0
    %277 = vmatprep.subr.mxu0 0.0
    %278 = vmatpush1.msra.mxu0 0.0
    %279 = vmatprep.subr.mxu0 0.0
    %280 = vmatpush1.msra.mxu0 0.0
    %281 = vmatprep.subr.mxu0 0.0
    %282 = vmatpush1.msra.mxu0 0.0
    %283 = vmatprep.subr.mxu0 0.0
    %284 = vmatpush1.msra.mxu0 0.0
    %285 = vmatprep.subr.mxu0 0.0
    %286 = vmatpush1.msra.mxu0 0.0
    %287 = vmatprep.subr.mxu0 0.0
    %288 = vmatpush1.msra.mxu0 0.0
    %289 = vmatprep.subr.mxu0 0.0
    %290 = vmatpush1.msra.mxu0 0.0
    %291 = vmatprep.subr.mxu0 0.0
    %292 = vmatpush1.msra.mxu0 0.0
    %293 = vmatprep.subr.mxu0 0.0
    %294 = vmatpush1.msra.mxu0 0.0
    %295 = vmatprep.subr.mxu0 0.0
    %296 = vmatpush1.msra.mxu0 0.0
    %297 = vmatprep.subr.mxu0 0.0
    %298 = vmatpush1.msra.mxu0 0.0
    %299 = vmatprep.subr.mxu0 0.0
    %300 = vmatpush1.msra.mxu0 0.0
    %301 = vmatprep.subr.mxu0 0.0
    %302 = vmatpush1.msra.mxu0 0.0
    %303 = vmatprep.subr.mxu0 0.0
    %304 = vmatpush1.msra.mxu0 0.0
    %305 = vmatprep.subr.mxu0 0.0
    %306 = vmatpush1.msra.mxu0 0.0
    %307 = vmatprep.subr.mxu0 0.0
    %308 = vmatpush1.msra.mxu0 0.0
    %309 = vmatprep.subr.mxu0 0.0
    %310 = vmatpush1.msra.mxu0 0.0
    %311 = vmatprep.subr.mxu0 0.0
    %312 = vmatpush1.msra.mxu0 0.0
    %313 = vmatprep.subr.mxu0 0.0
    %314 = vmatpush1.msra.mxu0 0.0
    %315 = vmatprep.subr.mxu0 0.0
    %316 = vmatpush1.msra.mxu0 0.0
    %317 = vmatprep.subr.mxu0 0.0
    %318 = vmatpush1.msra.mxu0 0.0
    %319 = vmatprep.subr.mxu0 0.0
    %320 = vmatpush1.msra.mxu0 0.0
    %321 = vmatprep.subr.mxu0 0.0
    %322 = vmatpush1.msra.mxu0 0.0
    %323 = vmatprep.subr.mxu0 0.0
    %324 = vmatpush1.msra.mxu0 0.0
    %325 = vmatprep.mubr.f32.mxu0 0.0
    %326 = vmatmul.mubr.f32.gmra.mrb[0].mxu0 %v259
    %v327 = vpop.f32.mrb[0].mxu0
    %v328 = vadd.f32 0.0, %v327
    %v329 = vpop.f32.mrb[0].mxu0
    %330 = vdwg.mxu0
    %331 = vst.msk [vmem:[#allocation2] sm:$0xff] %vm168, %v328
    %332 = vrot.lane.b32.xlu0 %v157, 120
    %v333 = vpop.permute.xlu0 %332
    %334 = vrot.lane.b32.xlu0 %v149, 88
    %v335 = vpop.permute.xlu0 %334
    %v336 = vsel %vm168, %v333, 0
    %v338 = vsel %vm168, %v335, 0
    %340 = vmatprep.subr.mxu0 0.0
    %341 = vmatpush1.xpose.msra.mxu0 %v338
    %342 = vmatprep.subr.mxu0 0.0
    %343 = vmatpush1.xpose.msra.mxu0 0.0
    %344 = vmatprep.subr.mxu0 0.0
    %345 = vmatpush1.xpose.msra.mxu0 0.0
    %346 = vmatprep.subr.mxu0 0.0
    %347 = vmatpush1.xpose.msra.mxu0 0.0
    %348 = vmatprep.subr.mxu0 0.0
    %349 = vmatpush1.xpose.msra.mxu0 0.0
    %350 = vmatprep.subr.mxu0 0.0
    %351 = vmatpush1.xpose.msra.mxu0 0.0
    %352 = vmatprep.subr.mxu0 0.0
    %353 = vmatpush1.xpose.msra.mxu0 0.0
    %354 = vmatprep.subr.mxu0 0.0
    %355 = vmatpush1.xpose.msra.mxu0 0.0
    %356 = vmatprep.subr.mxu0 0.0
    %357 = vmatpush1.xpose.msra.mxu0 0.0
    %358 = vmatprep.subr.mxu0 0.0
    %359 = vmatpush1.xpose.msra.mxu0 0.0
    %360 = vmatprep.subr.mxu0 0.0
    %361 = vmatpush1.xpose.msra.mxu0 0.0
    %362 = vmatprep.subr.mxu0 0.0
    %363 = vmatpush1.xpose.msra.mxu0 0.0
    %364 = vmatprep.subr.mxu0 0.0
    %365 = vmatpush1.xpose.msra.mxu0 0.0
    %366 = vmatprep.subr.mxu0 0.0
    %367 = vmatpush1.xpose.msra.mxu0 0.0
    %368 = vmatprep.subr.mxu0 0.0
    %369 = vmatpush1.xpose.msra.mxu0 0.0
    %370 = vmatprep.subr.mxu0 0.0
    %371 = vmatpush1.xpose.msra.mxu0 0.0
    %372 = vmatprep.subr.mxu0 0.0
    %373 = vmatpush1.xpose.msra.mxu0 0.0
    %374 = vmatprep.subr.mxu0 0.0
    %375 = vmatpush1.xpose.msra.mxu0 0.0
    %376 = vmatprep.subr.mxu0 0.0
    %377 = vmatpush1.xpose.msra.mxu0 0.0
    %378 = vmatprep.subr.mxu0 0.0
    %379 = vmatpush1.xpose.msra.mxu0 0.0
    %380 = vmatprep.subr.mxu0 0.0
    %381 = vmatpush1.xpose.msra.mxu0 0.0
    %382 = vmatprep.subr.mxu0 0.0
    %383 = vmatpush1.xpose.msra.mxu0 0.0
    %384 = vmatprep.subr.mxu0 0.0
    %385 = vmatpush1.xpose.msra.mxu0 0.0
    %386 = vmatprep.subr.mxu0 0.0
    %387 = vmatpush1.xpose.msra.mxu0 0.0
    %388 = vmatprep.subr.mxu0 0.0
    %389 = vmatpush1.xpose.msra.mxu0 0.0
    %390 = vmatprep.subr.mxu0 0.0
    %391 = vmatpush1.xpose.msra.mxu0 0.0
    %392 = vmatprep.subr.mxu0 0.0
    %393 = vmatpush1.xpose.msra.mxu0 0.0
    %394 = vmatprep.subr.mxu0 0.0
    %395 = vmatpush1.xpose.msra.mxu0 0.0
    %396 = vmatprep.subr.mxu0 0.0
    %397 = vmatpush1.xpose.msra.mxu0 0.0
    %398 = vmatprep.subr.mxu0 0.0
    %399 = vmatpush1.xpose.msra.mxu0 0.0
    %400 = vmatprep.subr.mxu0 0.0
    %401 = vmatpush1.xpose.msra.mxu0 0.0
    %402 = vmatprep.subr.mxu0 0.0
    %403 = vmatpush1.xpose.msra.mxu0 0.0
    %404 = vmatprep.mubr.f32.mxu0 0.0
    %405 = vmatmul.mubr.f32.gmra.mrb[0].mxu0 %v336
    %v406 = vpop.f32.mrb[0].mxu0
    %v407 = vadd.f32 %v164, %v406
    %v408 = vpop.f32.mrb[0].mxu0
    %409 = vdwg.mxu0
    %v410 = vsel %vm168, %v407, -inf
    %411 = vmax.xlane.f32.xlu0 %v410
    %v412 = vpop.xlane.xlu0 %411
    %v413 = vsub.f32 %v407, %v412
    %v414 = vmul.f32 %v413, 1.442695
    %v415 = vpow.pop %v414
    %v416 = vsel %vm168, %v415, 0.0
    %417 = vadd.xlane.f32.xlu0 %v416
    %v418 = vpop.xlane.xlu0 %417
    %v419 = vrcp.pop %v418
    %v420 = vmul.f32 %v415, %v419
    %421 = vrot.lane.b32.xlu0 %v149, 56
    %v422 = vpop.permute.xlu0 %421
    %v425 = vsel %vm168, %v420, 0
    %427 = vmatprep.subr.mxu0 0.0
    %428 = vmatpush1.msra.mxu0 %v422
    %429 = vmatprep.subr.mxu0 0.0
    %430 = vmatpush1.msra.mxu0 0.0
    %431 = vmatprep.subr.mxu0 0.0
    %432 = vmatpush1.msra.mxu0 0.0
    %433 = vmatprep.subr.mxu0 0.0
    %434 = vmatpush1.msra.mxu0 0.0
    %435 = vmatprep.subr.mxu0 0.0
    %436 = vmatpush1.msra.mxu0 0.0
    %437 = vmatprep.subr.mxu0 0.0
    %438 = vmatpush1.msra.mxu0 0.0
    %439 = vmatprep.subr.mxu0 0.0
    %440 = vmatpush1.msra.mxu0 0.0
    %441 = vmatprep.subr.mxu0 0.0
    %442 = vmatpush1.msra.mxu0 0.0
    %443 = vmatprep.subr.mxu0 0.0
    %444 = vmatpush1.msra.mxu0 0.0
    %445 = vmatprep.subr.mxu0 0.0
    %446 = vmatpush1.msra.mxu0 0.0
    %447 = vmatprep.subr.mxu0 0.0
    %448 = vmatpush1.msra.mxu0 0.0
    %449 = vmatprep.subr.mxu0 0.0
    %450 = vmatpush1.msra.mxu0 0.0
    %451 = vmatprep.subr.mxu0 0.0
    %452 = vmatpush1.msra.mxu0 0.0
    %453 = vmatprep.subr.mxu0 0.0
    %454 = vmatpush1.msra.mxu0 0.0
    %455 = vmatprep.subr.mxu0 0.0
    %456 = vmatpush1.msra.mxu0 0.0
    %457 = vmatprep.subr.mxu0 0.0
    %458 = vmatpush1.msra.mxu0 0.0
    %459 = vmatprep.subr.mxu0 0.0
    %460 = vmatpush1.msra.mxu0 0.0
    %461 = vmatprep.subr.mxu0 0.0
    %462 = vmatpush1.msra.mxu0 0.0
    %463 = vmatprep.subr.mxu0 0.0
    %464 = vmatpush1.msra.mxu0 0.0
    %465 = vmatprep.subr.mxu0 0.0
    %466 = vmatpush1.msra.mxu0 0.0
    %467 = vmatprep.subr.mxu0 0.0
    %468 = vmatpush1.msra.mxu0 0.0
    %469 = vmatprep.subr.mxu0 0.0
    %470 = vmatpush1.msra.mxu0 0.0
    %471 = vmatprep.subr.mxu0 0.0
    %472 = vmatpush1.msra.mxu0 0.0
    %473 = vmatprep.subr.mxu0 0.0
    %474 = vmatpush1.msra.mxu0 0.0
    %475 = vmatprep.subr.mxu0 0.0
    %476 = vmatpush1.msra.mxu0 0.0
    %477 = vmatprep.subr.mxu0 0.0
    %478 = vmatpush1.msra.mxu0 0.0
    %479 = vmatprep.subr.mxu0 0.0
    %480 = vmatpush1.msra.mxu0 0.0
    %481 = vmatprep.subr.mxu0 0.0
    %482 = vmatpush1.msra.mxu0 0.0
    %483 = vmatprep.subr.mxu0 0.0
    %484 = vmatpush1.msra.mxu0 0.0
    %485 = vmatprep.subr.mxu0 0.0
    %486 = vmatpush1.msra.mxu0 0.0
    %487 = vmatprep.subr.mxu0 0.0
    %488 = vmatpush1.msra.mxu0 0.0
    %489 = vmatprep.subr.mxu0 0.0
    %490 = vmatpush1.msra.mxu0 0.0
    %491 = vmatprep.mubr.f32.mxu0 0.0
    %492 = vmatmul.mubr.f32.gmra.mrb[0].mxu0 %v425
    %v493 = vpop.f32.mrb[0].mxu0
    %v494 = vadd.f32 0.0, %v493
    %v495 = vpop.f32.mrb[0].mxu0
    %496 = vdwg.mxu0
    %498 = vrot.lane.b32.xlu0 %v494, 8
    %v499 = vpop.permute.xlu0 %498
    %vm501 = vcmask 130112
    %502 = vst.msk [vmem:[#allocation2] sm:$0xff] %vm501, %v499
    %503 = vrot.lane.b32.xlu0 %v157, 112
    %v504 = vpop.permute.xlu0 %503
    %505 = vrot.lane.b32.xlu0 %v149, 80
    %v506 = vpop.permute.xlu0 %505
    %v507 = vsel %vm168, %v504, 0
    %v509 = vsel %vm168, %v506, 0
    %511 = vmatprep.subr.mxu0 0.0
    %512 = vmatpush1.xpose.msra.mxu0 %v509
    %513 = vmatprep.subr.mxu0 0.0
    %514 = vmatpush1.xpose.msra.mxu0 0.0
    %515 = vmatprep.subr.mxu0 0.0
    %516 = vmatpush1.xpose.msra.mxu0 0.0
    %517 = vmatprep.subr.mxu0 0.0
    %518 = vmatpush1.xpose.msra.mxu0 0.0
    %519 = vmatprep.subr.mxu0 0.0
    %520 = vmatpush1.xpose.msra.mxu0 0.0
    %521 = vmatprep.subr.mxu0 0.0
    %522 = vmatpush1.xpose.msra.mxu0 0.0
    %523 = vmatprep.subr.mxu0 0.0
    %524 = vmatpush1.xpose.msra.mxu0 0.0
    %525 = vmatprep.subr.mxu0 0.0
    %526 = vmatpush1.xpose.msra.mxu0 0.0
    %527 = vmatprep.subr.mxu0 0.0
    %528 = vmatpush1.xpose.msra.mxu0 0.0
    %529 = vmatprep.subr.mxu0 0.0
    %530 = vmatpush1.xpose.msra.mxu0 0.0
    %531 = vmatprep.subr.mxu0 0.0
    %532 = vmatpush1.xpose.msra.mxu0 0.0
    %533 = vmatprep.subr.mxu0 0.0
    %534 = vmatpush1.xpose.msra.mxu0 0.0
    %535 = vmatprep.subr.mxu0 0.0
    %536 = vmatpush1.xpose.msra.mxu0 0.0
    %537 = vmatprep.subr.mxu0 0.0
    %538 = vmatpush1.xpose.msra.mxu0 0.0
    %539 = vmatprep.subr.mxu0 0.0
    %540 = vmatpush1.xpose.msra.mxu0 0.0
    %541 = vmatprep.subr.mxu0 0.0
    %542 = vmatpush1.xpose.msra.mxu0 0.0
    %543 = vmatprep.subr.mxu0 0.0
    %544 = vmatpush1.xpose.msra.mxu0 0.0
    %545 = vmatprep.subr.mxu0 0.0
    %546 = vmatpush1.xpose.msra.mxu0 0.0
    %547 = vmatprep.subr.mxu0 0.0
    %548 = vmatpush1.xpose.msra.mxu0 0.0
    %549 = vmatprep.subr.mxu0 0.0
    %550 = vmatpush1.xpose.msra.mxu0 0.0
    %551 = vmatprep.subr.mxu0 0.0
    %552 = vmatpush1.xpose.msra.mxu0 0.0
    %553 = vmatprep.subr.mxu0 0.0
    %554 = vmatpush1.xpose.msra.mxu0 0.0
    %555 = vmatprep.subr.mxu0 0.0
    %556 = vmatpush1.xpose.msra.mxu0 0.0
    %557 = vmatprep.subr.mxu0 0.0
    %558 = vmatpush1.xpose.msra.mxu0 0.0
    %559 = vmatprep.subr.mxu0 0.0
    %560 = vmatpush1.xpose.msra.mxu0 0.0
    %561 = vmatprep.subr.mxu0 0.0
    %562 = vmatpush1.xpose.msra.mxu0 0.0
    %563 = vmatprep.subr.mxu0 0.0
    %564 = vmatpush1.xpose.msra.mxu0 0.0
    %565 = vmatprep.subr.mxu0 0.0
    %566 = vmatpush1.xpose.msra.mxu0 0.0
    %567 = vmatprep.subr.mxu0 0.0
    %568 = vmatpush1.xpose.msra.mxu0 0.0
    %569 = vmatprep.subr.mxu0 0.0
    %570 = vmatpush1.xpose.msra.mxu0 0.0
    %571 = vmatprep.subr.mxu0 0.0
    %572 = vmatpush1.xpose.msra.mxu0 0.0
    %573 = vmatprep.subr.mxu0 0.0
    %574 = vmatpush1.xpose.msra.mxu0 0.0
    %575 = vmatprep.mubr.f32.mxu0 0.0
    %576 = vmatmul.mubr.f32.gmra.mrb[0].mxu0 %v507
    %v577 = vpop.f32.mrb[0].mxu0
    %v578 = vadd.f32 %v164, %v577
    %v579 = vpop.f32.mrb[0].mxu0
    %580 = vdwg.mxu0
    %v581 = vsel %vm168, %v578, -inf
    %582 = vmax.xlane.f32.xlu0 %v581
    %v583 = vpop.xlane.xlu0 %582
    %v584 = vsub.f32 %v578, %v583
    %v585 = vmul.f32 %v584, 1.442695
    %v586 = vpow.pop %v585
    %v587 = vsel %vm168, %v586, 0.0
    %588 = vadd.xlane.f32.xlu0 %v587
    %v589 = vpop.xlane.xlu0 %588
    %v590 = vrcp.pop %v589
    %v591 = vmul.f32 %v586, %v590
    %592 = vrot.lane.b32.xlu0 %v149, 48
    %v593 = vpop.permute.xlu0 %592
    %v596 = vsel %vm168, %v591, 0
    %598 = vmatprep.subr.mxu0 0.0
    %599 = vmatpush1.msra.mxu0 %v593
    %600 = vmatprep.subr.mxu0 0.0
    %601 = vmatpush1.msra.mxu0 0.0
    %602 = vmatprep.subr.mxu0 0.0
    %603 = vmatpush1.msra.mxu0 0.0
    %604 = vmatprep.subr.mxu0 0.0
    %605 = vmatpush1.msra.mxu0 0.0
    %606 = vmatprep.subr.mxu0 0.0
    %607 = vmatpush1.msra.mxu0 0.0
    %608 = vmatprep.subr.mxu0 0.0
    %609 = vmatpush1.msra.mxu0 0.0
    %610 = vmatprep.subr.mxu0 0.0
    %611 = vmatpush1.msra.mxu0 0.0
    %612 = vmatprep.subr.mxu0 0.0
    %613 = vmatpush1.msra.mxu0 0.0
    %614 = vmatprep.subr.mxu0 0.0
    %615 = vmatpush1.msra.mxu0 0.0
    %616 = vmatprep.subr.mxu0 0.0
    %617 = vmatpush1.msra.mxu0 0.0
    %618 = vmatprep.subr.mxu0 0.0
    %619 = vmatpush1.msra.mxu0 0.0
    %620 = vmatprep.subr.mxu0 0.0
    %621 = vmatpush1.msra.mxu0 0.0
    %622 = vmatprep.subr.mxu0 0.0
    %623 = vmatpush1.msra.mxu0 0.0
    %624 = vmatprep.subr.mxu0 0.0
    %625 = vmatpush1.msra.mxu0 0.0
    %626 = vmatprep.subr.mxu0 0.0
    %627 = vmatpush1.msra.mxu0 0.0
    %628 = vmatprep.subr.mxu0 0.0
    %629 = vmatpush1.msra.mxu0 0.0
    %630 = vmatprep.subr.mxu0 0.0
    %631 = vmatpush1.msra.mxu0 0.0
    %632 = vmatprep.subr.mxu0 0.0
    %633 = vmatpush1.msra.mxu0 0.0
    %634 = vmatprep.subr.mxu0 0.0
    %635 = vmatpush1.msra.mxu0 0.0
    %636 = vmatprep.subr.mxu0 0.0
    %637 = vmatpush1.msra.mxu0 0.0
    %638 = vmatprep.subr.mxu0 0.0
    %639 = vmatpush1.msra.mxu0 0.0
    %640 = vmatprep.subr.mxu0 0.0
    %641 = vmatpush1.msra.mxu0 0.0
    %642 = vmatprep.subr.mxu0 0.0
    %643 = vmatpush1.msra.mxu0 0.0
    %644 = vmatprep.subr.mxu0 0.0
    %645 = vmatpush1.msra.mxu0 0.0
    %646 = vmatprep.subr.mxu0 0.0
    %647 = vmatpush1.msra.mxu0 0.0
    %648 = vmatprep.subr.mxu0 0.0
    %649 = vmatpush1.msra.mxu0 0.0
    %650 = vmatprep.subr.mxu0 0.0
    %651 = vmatpush1.msra.mxu0 0.0
    %652 = vmatprep.subr.mxu0 0.0
    %653 = vmatpush1.msra.mxu0 0.0
    %654 = vmatprep.subr.mxu0 0.0
    %655 = vmatpush1.msra.mxu0 0.0
    %656 = vmatprep.subr.mxu0 0.0
    %657 = vmatpush1.msra.mxu0 0.0
    %658 = vmatprep.subr.mxu0 0.0
    %659 = vmatpush1.msra.mxu0 0.0
    %660 = vmatprep.subr.mxu0 0.0
    %661 = vmatpush1.msra.mxu0 0.0
    %662 = vmatprep.mubr.f32.mxu0 0.0
    %663 = vmatmul.mubr.f32.gmra.mrb[0].mxu0 %v596
    %v664 = vpop.f32.mrb[0].mxu0
    %v665 = vadd.f32 0.0, %v664
    %v666 = vpop.f32.mrb[0].mxu0
    %667 = vdwg.mxu0
    %669 = vrot.lane.b32.xlu0 %v665, 16
    %v670 = vpop.permute.xlu0 %669
    %vm672 = vcmask 195712
    %673 = vst.msk [vmem:[#allocation2] sm:$0xff] %vm672, %v670
    %674 = vrot.lane.b32.xlu0 %v157, 104
    %v675 = vpop.permute.xlu0 %674
    %676 = vrot.lane.b32.xlu0 %v149, 72
    %v677 = vpop.permute.xlu0 %676
    %v678 = vsel %vm168, %v675, 0
    %v680 = vsel %vm168, %v677, 0
    %682 = vmatprep.subr.mxu0 0.0
    %683 = vmatpush1.xpose.msra.mxu0 %v680
    %684 = vmatprep.subr.mxu0 0.0
    %685 = vmatpush1.xpose.msra.mxu0 0.0
    %686 = vmatprep.subr.mxu0 0.0
    %687 = vmatpush1.xpose.msra.mxu0 0.0
    %688 = vmatprep.subr.mxu0 0.0
    %689 = vmatpush1.xpose.msra.mxu0 0.0
    %690 = vmatprep.subr.mxu0 0.0
    %691 = vmatpush1.xpose.msra.mxu0 0.0
    %692 = vmatprep.subr.mxu0 0.0
    %693 = vmatpush1.xpose.msra.mxu0 0.0
    %694 = vmatprep.subr.mxu0 0.0
    %695 = vmatpush1.xpose.msra.mxu0 0.0
    %696 = vmatprep.subr.mxu0 0.0
    %697 = vmatpush1.xpose.msra.mxu0 0.0
    %698 = vmatprep.subr.mxu0 0.0
    %699 = vmatpush1.xpose.msra.mxu0 0.0
    %700 = vmatprep.subr.mxu0 0.0
    %701 = vmatpush1.xpose.msra.mxu0 0.0
    %702 = vmatprep.subr.mxu0 0.0
    %703 = vmatpush1.xpose.msra.mxu0 0.0
    %704 = vmatprep.subr.mxu0 0.0
    %705 = vmatpush1.xpose.msra.mxu0 0.0
    %706 = vmatprep.subr.mxu0 0.0
    %707 = vmatpush1.xpose.msra.mxu0 0.0
    %708 = vmatprep.subr.mxu0 0.0
    %709 = vmatpush1.xpose.msra.mxu0 0.0
    %710 = vmatprep.subr.mxu0 0.0
    %711 = vmatpush1.xpose.msra.mxu0 0.0
    %712 = vmatprep.subr.mxu0 0.0
    %713 = vmatpush1.xpose.msra.mxu0 0.0
    %714 = vmatprep.subr.mxu0 0.0
    %715 = vmatpush1.xpose.msra.mxu0 0.0
    %716 = vmatprep.subr.mxu0 0.0
    %717 = vmatpush1.xpose.msra.mxu0 0.0
    %718 = vmatprep.subr.mxu0 0.0
    %719 = vmatpush1.xpose.msra.mxu0 0.0
    %720 = vmatprep.subr.mxu0 0.0
    %721 = vmatpush1.xpose.msra.mxu0 0.0
    %722 = vmatprep.subr.mxu0 0.0
    %723 = vmatpush1.xpose.msra.mxu0 0.0
    %724 = vmatprep.subr.mxu0 0.0
    %725 = vmatpush1.xpose.msra.mxu0 0.0
    %726 = vmatprep.subr.mxu0 0.0
    %727 = vmatpush1.xpose.msra.mxu0 0.0
    %728 = vmatprep.subr.mxu0 0.0
    %729 = vmatpush1.xpose.msra.mxu0 0.0
    %730 = vmatprep.subr.mxu0 0.0
    %731 = vmatpush1.xpose.msra.mxu0 0.0
    %732 = vmatprep.subr.mxu0 0.0
    %733 = vmatpush1.xpose.msra.mxu0 0.0
    %734 = vmatprep.subr.mxu0 0.0
    %735 = vmatpush1.xpose.msra.mxu0 0.0
    %736 = vmatprep.subr.mxu0 0.0
    %737 = vmatpush1.xpose.msra.mxu0 0.0
    %738 = vmatprep.subr.mxu0 0.0
    %739 = vmatpush1.xpose.msra.mxu0 0.0
    %740 = vmatprep.subr.mxu0 0.0
    %741 = vmatpush1.xpose.msra.mxu0 0.0
    %742 = vmatprep.subr.mxu0 0.0
    %743 = vmatpush1.xpose.msra.mxu0 0.0
    %744 = vmatprep.subr.mxu0 0.0
    %745 = vmatpush1.xpose.msra.mxu0 0.0
    %746 = vmatprep.mubr.f32.mxu0 0.0
    %747 = vmatmul.mubr.f32.gmra.mrb[0].mxu0 %v678
    %v748 = vpop.f32.mrb[0].mxu0
    %v749 = vadd.f32 %v164, %v748
    %v750 = vpop.f32.mrb[0].mxu0
    %751 = vdwg.mxu0
    %v752 = vsel %vm168, %v749, -inf
    %753 = vmax.xlane.f32.xlu0 %v752
    %v754 = vpop.xlane.xlu0 %753
    %v755 = vsub.f32 %v749, %v754
    %v756 = vmul.f32 %v755, 1.442695
    %v757 = vpow.pop %v756
    %v758 = vsel %vm168, %v757, 0.0
    %759 = vadd.xlane.f32.xlu0 %v758
    %v760 = vpop.xlane.xlu0 %759
    %v761 = vrcp.pop %v760
    %v762 = vmul.f32 %v757, %v761
    %763 = vrot.lane.b32.xlu0 %v149, 40
    %v764 = vpop.permute.xlu0 %763
    %v767 = vsel %vm168, %v762, 0
    %769 = vmatprep.subr.mxu0 0.0
    %770 = vmatpush1.msra.mxu0 %v764
    %771 = vmatprep.subr.mxu0 0.0
    %772 = vmatpush1.msra.mxu0 0.0
    %773 = vmatprep.subr.mxu0 0.0
    %774 = vmatpush1.msra.mxu0 0.0
    %775 = vmatprep.subr.mxu0 0.0
    %776 = vmatpush1.msra.mxu0 0.0
    %777 = vmatprep.subr.mxu0 0.0
    %778 = vmatpush1.msra.mxu0 0.0
    %779 = vmatprep.subr.mxu0 0.0
    %780 = vmatpush1.msra.mxu0 0.0
    %781 = vmatprep.subr.mxu0 0.0
    %782 = vmatpush1.msra.mxu0 0.0
    %783 = vmatprep.subr.mxu0 0.0
    %784 = vmatpush1.msra.mxu0 0.0
    %785 = vmatprep.subr.mxu0 0.0
    %786 = vmatpush1.msra.mxu0 0.0
    %787 = vmatprep.subr.mxu0 0.0
    %788 = vmatpush1.msra.mxu0 0.0
    %789 = vmatprep.subr.mxu0 0.0
    %790 = vmatpush1.msra.mxu0 0.0
    %791 = vmatprep.subr.mxu0 0.0
    %792 = vmatpush1.msra.mxu0 0.0
    %793 = vmatprep.subr.mxu0 0.0
    %794 = vmatpush1.msra.mxu0 0.0
    %795 = vmatprep.subr.mxu0 0.0
    %796 = vmatpush1.msra.mxu0 0.0
    %797 = vmatprep.subr.mxu0 0.0
    %798 = vmatpush1.msra.mxu0 0.0
    %799 = vmatprep.subr.mxu0 0.0
    %800 = vmatpush1.msra.mxu0 0.0
    %801 = vmatprep.subr.mxu0 0.0
    %802 = vmatpush1.msra.mxu0 0.0
    %803 = vmatprep.subr.mxu0 0.0
    %804 = vmatpush1.msra.mxu0 0.0
    %805 = vmatprep.subr.mxu0 0.0
    %806 = vmatpush1.msra.mxu0 0.0
    %807 = vmatprep.subr.mxu0 0.0
    %808 = vmatpush1.msra.mxu0 0.0
    %809 = vmatprep.subr.mxu0 0.0
    %810 = vmatpush1.msra.mxu0 0.0
    %811 = vmatprep.subr.mxu0 0.0
    %812 = vmatpush1.msra.mxu0 0.0
    %813 = vmatprep.subr.mxu0 0.0
    %814 = vmatpush1.msra.mxu0 0.0
    %815 = vmatprep.subr.mxu0 0.0
    %816 = vmatpush1.msra.mxu0 0.0
    %817 = vmatprep.subr.mxu0 0.0
    %818 = vmatpush1.msra.mxu0 0.0
    %819 = vmatprep.subr.mxu0 0.0
    %820 = vmatpush1.msra.mxu0 0.0
    %821 = vmatprep.subr.mxu0 0.0
    %822 = vmatpush1.msra.mxu0 0.0
    %823 = vmatprep.subr.mxu0 0.0
    %824 = vmatpush1.msra.mxu0 0.0
    %825 = vmatprep.subr.mxu0 0.0
    %826 = vmatpush1.msra.mxu0 0.0
    %827 = vmatprep.subr.mxu0 0.0
    %828 = vmatpush1.msra.mxu0 0.0
    %829 = vmatprep.subr.mxu0 0.0
    %830 = vmatpush1.msra.mxu0 0.0
    %831 = vmatprep.subr.mxu0 0.0
    %832 = vmatpush1.msra.mxu0 0.0
    %833 = vmatprep.mubr.f32.mxu0 0.0
    %834 = vmatmul.mubr.f32.gmra.mrb[0].mxu0 %v767
    %v835 = vpop.f32.mrb[0].mxu0
    %v836 = vadd.f32 0.0, %v835
    %v837 = vpop.f32.mrb[0].mxu0
    %838 = vdwg.mxu0
    %840 = vrot.lane.b32.xlu0 %v836, 24
    %v841 = vpop.permute.xlu0 %840
    %vm843 = vcmask 261312
    %844 = vst.msk [vmem:[#allocation2] sm:$0xff] %vm843, %v841
    %846 = vrot.lane.b32.xlu0 %v154, 96
    %v847 = vpop.permute.xlu0 %846
    %v849 = vsel %vm168, %v158, 0
    %v851 = vsel %vm168, %v847, 0
    %853 = vmatprep.subr.mxu0 0.0
    %854 = vmatpush1.xpose.msra.mxu0 %v851
    %855 = vmatprep.subr.mxu0 0.0
    %856 = vmatpush1.xpose.msra.mxu0 0.0
    %857 = vmatprep.subr.mxu0 0.0
    %858 = vmatpush1.xpose.msra.mxu0 0.0
    %859 = vmatprep.subr.mxu0 0.0
    %860 = vmatpush1.xpose.msra.mxu0 0.0
    %861 = vmatprep.subr.mxu0 0.0
    %862 = vmatpush1.xpose.msra.mxu0 0.0
    %863 = vmatprep.subr.mxu0 0.0
    %864 = vmatpush1.xpose.msra.mxu0 0.0
    %865 = vmatprep.subr.mxu0 0.0
    %866 = vmatpush1.xpose.msra.mxu0 0.0
    %867 = vmatprep.subr.mxu0 0.0
    %868 = vmatpush1.xpose.msra.mxu0 0.0
    %869 = vmatprep.subr.mxu0 0.0
    %870 = vmatpush1.xpose.msra.mxu0 0.0
    %871 = vmatprep.subr.mxu0 0.0
    %872 = vmatpush1.xpose.msra.mxu0 0.0
    %873 = vmatprep.subr.mxu0 0.0
    %874 = vmatpush1.xpose.msra.mxu0 0.0
    %875 = vmatprep.subr.mxu0 0.0
    %876 = vmatpush1.xpose.msra.mxu0 0.0
    %877 = vmatprep.subr.mxu0 0.0
    %878 = vmatpush1.xpose.msra.mxu0 0.0
    %879 = vmatprep.subr.mxu0 0.0
    %880 = vmatpush1.xpose.msra.mxu0 0.0
    %881 = vmatprep.subr.mxu0 0.0
    %882 = vmatpush1.xpose.msra.mxu0 0.0
    %883 = vmatprep.subr.mxu0 0.0
    %884 = vmatpush1.xpose.msra.mxu0 0.0
    %885 = vmatprep.subr.mxu0 0.0
    %886 = vmatpush1.xpose.msra.mxu0 0.0
    %887 = vmatprep.subr.mxu0 0.0
    %888 = vmatpush1.xpose.msra.mxu0 0.0
    %889 = vmatprep.subr.mxu0 0.0
    %890 = vmatpush1.xpose.msra.mxu0 0.0
    %891 = vmatprep.subr.mxu0 0.0
    %892 = vmatpush1.xpose.msra.mxu0 0.0
    %893 = vmatprep.subr.mxu0 0.0
    %894 = vmatpush1.xpose.msra.mxu0 0.0
    %895 = vmatprep.subr.mxu0 0.0
    %896 = vmatpush1.xpose.msra.mxu0 0.0
    %897 = vmatprep.subr.mxu0 0.0
    %898 = vmatpush1.xpose.msra.mxu0 0.0
    %899 = vmatprep.subr.mxu0 0.0
    %900 = vmatpush1.xpose.msra.mxu0 0.0
    %901 = vmatprep.subr.mxu0 0.0
    %902 = vmatpush1.xpose.msra.mxu0 0.0
    %903 = vmatprep.subr.mxu0 0.0
    %904 = vmatpush1.xpose.msra.mxu0 0.0
    %905 = vmatprep.subr.mxu0 0.0
    %906 = vmatpush1.xpose.msra.mxu0 0.0
    %907 = vmatprep.subr.mxu0 0.0
    %908 = vmatpush1.xpose.msra.mxu0 0.0
    %909 = vmatprep.subr.mxu0 0.0
    %910 = vmatpush1.xpose.msra.mxu0 0.0
    %911 = vmatprep.subr.mxu0 0.0
    %912 = vmatpush1.xpose.msra.mxu0 0.0
    %913 = vmatprep.subr.mxu0 0.0
    %914 = vmatpush1.xpose.msra.mxu0 0.0
    %915 = vmatprep.subr.mxu0 0.0
    %916 = vmatpush1.xpose.msra.mxu0 0.0
    %917 = vmatprep.mubr.f32.mxu0 0.0
    %918 = vmatmul.mubr.f32.gmra.mrb[0].mxu0 %v849
    %v919 = vpop.f32.mrb[0].mxu0
    %v920 = vadd.f32 %v164, %v919
    %v921 = vpop.f32.mrb[0].mxu0
    %922 = vdwg.mxu0
    %v923 = vsel %vm168, %v920, -inf
    %924 = vmax.xlane.f32.xlu0 %v923
    %v925 = vpop.xlane.xlu0 %924
    %v926 = vsub.f32 %v920, %v925
    %v927 = vmul.f32 %v926, 1.442695
    %v928 = vpow.pop %v927
    %v929 = vsel %vm168, %v928, 0.0
    %930 = vadd.xlane.f32.xlu0 %v929
    %v931 = vpop.xlane.xlu0 %930
    %v932 = vrcp.pop %v931
    %v933 = vmul.f32 %v928, %v932
    %934 = vrot.lane.b32.xlu0 %v154, 64
    %v935 = vpop.permute.xlu0 %934
    %v938 = vsel %vm168, %v933, 0
    %940 = vmatprep.subr.mxu0 0.0
    %941 = vmatpush1.msra.mxu0 %v935
    %942 = vmatprep.subr.mxu0 0.0
    %943 = vmatpush1.msra.mxu0 0.0
    %944 = vmatprep.subr.mxu0 0.0
    %945 = vmatpush1.msra.mxu0 0.0
    %946 = vmatprep.subr.mxu0 0.0
    %947 = vmatpush1.msra.mxu0 0.0
    %948 = vmatprep.subr.mxu0 0.0
    %949 = vmatpush1.msra.mxu0 0.0
    %950 = vmatprep.subr.mxu0 0.0
    %951 = vmatpush1.msra.mxu0 0.0
    %952 = vmatprep.subr.mxu0 0.0
    %953 = vmatpush1.msra.mxu0 0.0
    %954 = vmatprep.subr.mxu0 0.0
    %955 = vmatpush1.msra.mxu0 0.0
    %956 = vmatprep.subr.mxu0 0.0
    %957 = vmatpush1.msra.mxu0 0.0
    %958 = vmatprep.subr.mxu0 0.0
    %959 = vmatpush1.msra.mxu0 0.0
    %960 = vmatprep.subr.mxu0 0.0
    %961 = vmatpush1.msra.mxu0 0.0
    %962 = vmatprep.subr.mxu0 0.0
    %963 = vmatpush1.msra.mxu0 0.0
    %964 = vmatprep.subr.mxu0 0.0
    %965 = vmatpush1.msra.mxu0 0.0
    %966 = vmatprep.subr.mxu0 0.0
    %967 = vmatpush1.msra.mxu0 0.0
    %968 = vmatprep.subr.mxu0 0.0
    %969 = vmatpush1.msra.mxu0 0.0
    %970 = vmatprep.subr.mxu0 0.0
    %971 = vmatpush1.msra.mxu0 0.0
    %972 = vmatprep.subr.mxu0 0.0
    %973 = vmatpush1.msra.mxu0 0.0
    %974 = vmatprep.subr.mxu0 0.0
    %975 = vmatpush1.msra.mxu0 0.0
    %976 = vmatprep.subr.mxu0 0.0
    %977 = vmatpush1.msra.mxu0 0.0
    %978 = vmatprep.subr.mxu0 0.0
    %979 = vmatpush1.msra.mxu0 0.0
    %980 = vmatprep.subr.mxu0 0.0
    %981 = vmatpush1.msra.mxu0 0.0
    %982 = vmatprep.subr.mxu0 0.0
    %983 = vmatpush1.msra.mxu0 0.0
    %984 = vmatprep.subr.mxu0 0.0
    %985 = vmatpush1.msra.mxu0 0.0
    %986 = vmatprep.subr.mxu0 0.0
    %987 = vmatpush1.msra.mxu0 0.0
    %988 = vmatprep.subr.mxu0 0.0
    %989 = vmatpush1.msra.mxu0 0.0
    %990 = vmatprep.subr.mxu0 0.0
    %991 = vmatpush1.msra.mxu0 0.0
    %992 = vmatprep.subr.mxu0 0.0
    %993 = vmatpush1.msra.mxu0 0.0
    %994 = vmatprep.subr.mxu0 0.0
    %995 = vmatpush1.msra.mxu0 0.0
    %996 = vmatprep.subr.mxu0 0.0
    %997 = vmatpush1.msra.mxu0 0.0
    %998 = vmatprep.subr.mxu0 0.0
    %999 = vmatpush1.msra.mxu0 0.0
    %1000 = vmatprep.subr.mxu0 0.0
    %1001 = vmatpush1.msra.mxu0 0.0
    %1002 = vmatprep.subr.mxu0 0.0
    %1003 = vmatpush1.msra.mxu0 0.0
    %1004 = vmatprep.mubr.f32.mxu0 0.0
    %1005 = vmatmul.mubr.f32.gmra.mrb[0].mxu0 %v938
    %v1006 = vpop.f32.mrb[0].mxu0
    %v1007 = vadd.f32 0.0, %v1006
    %v1008 = vpop.f32.mrb[0].mxu0
    %1009 = vdwg.mxu0
    %1010 = vst.msk [vmem:[#allocation2 + $0x8] sm:$0xff] %vm168, %v1007
    %1011 = vrot.lane.b32.xlu0 %v158, 120
    %v1012 = vpop.permute.xlu0 %1011
    %1013 = vrot.lane.b32.xlu0 %v154, 88
    %v1014 = vpop.permute.xlu0 %1013
    %v1015 = vsel %vm168, %v1012, 0
    %v1017 = vsel %vm168, %v1014, 0
    %1019 = vmatprep.subr.mxu0 0.0
    %1020 = vmatpush1.xpose.msra.mxu0 %v1017
    %1021 = vmatprep.subr.mxu0 0.0
    %1022 = vmatpush1.xpose.msra.mxu0 0.0
    %1023 = vmatprep.subr.mxu0 0.0
    %1024 = vmatpush1.xpose.msra.mxu0 0.0
    %1025 = vmatprep.subr.mxu0 0.0
    %1026 = vmatpush1.xpose.msra.mxu0 0.0
    %1027 = vmatprep.subr.mxu0 0.0
    %1028 = vmatpush1.xpose.msra.mxu0 0.0
    %1029 = vmatprep.subr.mxu0 0.0
    %1030 = vmatpush1.xpose.msra.mxu0 0.0
    %1031 = vmatprep.subr.mxu0 0.0
    %1032 = vmatpush1.xpose.msra.mxu0 0.0
    %1033 = vmatprep.subr.mxu0 0.0
    %1034 = vmatpush1.xpose.msra.mxu0 0.0
    %1035 = vmatprep.subr.mxu0 0.0
    %1036 = vmatpush1.xpose.msra.mxu0 0.0
    %1037 = vmatprep.subr.mxu0 0.0
    %1038 = vmatpush1.xpose.msra.mxu0 0.0
    %1039 = vmatprep.subr.mxu0 0.0
    %1040 = vmatpush1.xpose.msra.mxu0 0.0
    %1041 = vmatprep.subr.mxu0 0.0
    %1042 = vmatpush1.xpose.msra.mxu0 0.0
    %1043 = vmatprep.subr.mxu0 0.0
    %1044 = vmatpush1.xpose.msra.mxu0 0.0
    %1045 = vmatprep.subr.mxu0 0.0
    %1046 = vmatpush1.xpose.msra.mxu0 0.0
    %1047 = vmatprep.subr.mxu0 0.0
    %1048 = vmatpush1.xpose.msra.mxu0 0.0
    %1049 = vmatprep.subr.mxu0 0.0
    %1050 = vmatpush1.xpose.msra.mxu0 0.0
    %1051 = vmatprep.subr.mxu0 0.0
    %1052 = vmatpush1.xpose.msra.mxu0 0.0
    %1053 = vmatprep.subr.mxu0 0.0
    %1054 = vmatpush1.xpose.msra.mxu0 0.0
    %1055 = vmatprep.subr.mxu0 0.0
    %1056 = vmatpush1.xpose.msra.mxu0 0.0
    %1057 = vmatprep.subr.mxu0 0.0
    %1058 = vmatpush1.xpose.msra.mxu0 0.0
    %1059 = vmatprep.subr.mxu0 0.0
    %1060 = vmatpush1.xpose.msra.mxu0 0.0
    %1061 = vmatprep.subr.mxu0 0.0
    %1062 = vmatpush1.xpose.msra.mxu0 0.0
    %1063 = vmatprep.subr.mxu0 0.0
    %1064 = vmatpush1.xpose.msra.mxu0 0.0
    %1065 = vmatprep.subr.mxu0 0.0
    %1066 = vmatpush1.xpose.msra.mxu0 0.0
    %1067 = vmatprep.subr.mxu0 0.0
    %1068 = vmatpush1.xpose.msra.mxu0 0.0
    %1069 = vmatprep.subr.mxu0 0.0
    %1070 = vmatpush1.xpose.msra.mxu0 0.0
    %1071 = vmatprep.subr.mxu0 0.0
    %1072 = vmatpush1.xpose.msra.mxu0 0.0
    %1073 = vmatprep.subr.mxu0 0.0
    %1074 = vmatpush1.xpose.msra.mxu0 0.0
    %1075 = vmatprep.subr.mxu0 0.0
    %1076 = vmatpush1.xpose.msra.mxu0 0.0
    %1077 = vmatprep.subr.mxu0 0.0
    %1078 = vmatpush1.xpose.msra.mxu0 0.0
    %1079 = vmatprep.subr.mxu0 0.0
    %1080 = vmatpush1.xpose.msra.mxu0 0.0
    %1081 = vmatprep.subr.mxu0 0.0
    %1082 = vmatpush1.xpose.msra.mxu0 0.0
    %1083 = vmatprep.mubr.f32.mxu0 0.0
    %1084 = vmatmul.mubr.f32.gmra.mrb[0].mxu0 %v1015
    %v1085 = vpop.f32.mrb[0].mxu0
    %v1086 = vadd.f32 %v164, %v1085
    %v1087 = vpop.f32.mrb[0].mxu0
    %1088 = vdwg.mxu0
    %v1089 = vsel %vm168, %v1086, -inf
    %1090 = vmax.xlane.f32.xlu0 %v1089
    %v1091 = vpop.xlane.xlu0 %1090
    %v1092 = vsub.f32 %v1086, %v1091
    %v1093 = vmul.f32 %v1092, 1.442695
    %v1094 = vpow.pop %v1093
    %v1095 = vsel %vm168, %v1094, 0.0
    %1096 = vadd.xlane.f32.xlu0 %v1095
    %v1097 = vpop.xlane.xlu0 %1096
    %v1098 = vrcp.pop %v1097
    %v1099 = vmul.f32 %v1094, %v1098
    %1100 = vrot.lane.b32.xlu0 %v154, 56
    %v1101 = vpop.permute.xlu0 %1100
    %v1104 = vsel %vm168, %v1099, 0
    %1106 = vmatprep.subr.mxu0 0.0
    %1107 = vmatpush1.msra.mxu0 %v1101
    %1108 = vmatprep.subr.mxu0 0.0
    %1109 = vmatpush1.msra.mxu0 0.0
    %1110 = vmatprep.subr.mxu0 0.0
    %1111 = vmatpush1.msra.mxu0 0.0
    %1112 = vmatprep.subr.mxu0 0.0
    %1113 = vmatpush1.msra.mxu0 0.0
    %1114 = vmatprep.subr.mxu0 0.0
    %1115 = vmatpush1.msra.mxu0 0.0
    %1116 = vmatprep.subr.mxu0 0.0
    %1117 = vmatpush1.msra.mxu0 0.0
    %1118 = vmatprep.subr.mxu0 0.0
    %1119 = vmatpush1.msra.mxu0 0.0
    %1120 = vmatprep.subr.mxu0 0.0
    %1121 = vmatpush1.msra.mxu0 0.0
    %1122 = vmatprep.subr.mxu0 0.0
    %1123 = vmatpush1.msra.mxu0 0.0
    %1124 = vmatprep.subr.mxu0 0.0
    %1125 = vmatpush1.msra.mxu0 0.0
    %1126 = vmatprep.subr.mxu0 0.0
    %1127 = vmatpush1.msra.mxu0 0.0
    %1128 = vmatprep.subr.mxu0 0.0
    %1129 = vmatpush1.msra.mxu0 0.0
    %1130 = vmatprep.subr.mxu0 0.0
    %1131 = vmatpush1.msra.mxu0 0.0
    %1132 = vmatprep.subr.mxu0 0.0
    %1133 = vmatpush1.msra.mxu0 0.0
    %1134 = vmatprep.subr.mxu0 0.0
    %1135 = vmatpush1.msra.mxu0 0.0
    %1136 = vmatprep.subr.mxu0 0.0
    %1137 = vmatpush1.msra.mxu0 0.0
    %1138 = vmatprep.subr.mxu0 0.0
    %1139 = vmatpush1.msra.mxu0 0.0
    %1140 = vmatprep.subr.mxu0 0.0
    %1141 = vmatpush1.msra.mxu0 0.0
    %1142 = vmatprep.subr.mxu0 0.0
    %1143 = vmatpush1.msra.mxu0 0.0
    %1144 = vmatprep.subr.mxu0 0.0
    %1145 = vmatpush1.msra.mxu0 0.0
    %1146 = vmatprep.subr.mxu0 0.0
    %1147 = vmatpush1.msra.mxu0 0.0
    %1148 = vmatprep.subr.mxu0 0.0
    %1149 = vmatpush1.msra.mxu0 0.0
    %1150 = vmatprep.subr.mxu0 0.0
    %1151 = vmatpush1.msra.mxu0 0.0
    %1152 = vmatprep.subr.mxu0 0.0
    %1153 = vmatpush1.msra.mxu0 0.0
    %1154 = vmatprep.subr.mxu0 0.0
    %1155 = vmatpush1.msra.mxu0 0.0
    %1156 = vmatprep.subr.mxu0 0.0
    %1157 = vmatpush1.msra.mxu0 0.0
    %1158 = vmatprep.subr.mxu0 0.0
    %1159 = vmatpush1.msra.mxu0 0.0
    %1160 = vmatprep.subr.mxu0 0.0
    %1161 = vmatpush1.msra.mxu0 0.0
    %1162 = vmatprep.subr.mxu0 0.0
    %1163 = vmatpush1.msra.mxu0 0.0
    %1164 = vmatprep.subr.mxu0 0.0
    %1165 = vmatpush1.msra.mxu0 0.0
    %1166 = vmatprep.subr.mxu0 0.0
    %1167 = vmatpush1.msra.mxu0 0.0
    %1168 = vmatprep.subr.mxu0 0.0
    %1169 = vmatpush1.msra.mxu0 0.0
    %1170 = vmatprep.mubr.f32.mxu0 0.0
    %1171 = vmatmul.mubr.f32.gmra.mrb[0].mxu0 %v1104
    %v1172 = vpop.f32.mrb[0].mxu0
    %v1173 = vadd.f32 0.0, %v1172
    %v1174 = vpop.f32.mrb[0].mxu0
    %1175 = vdwg.mxu0
    %1177 = vrot.lane.b32.xlu0 %v1173, 8
    %v1178 = vpop.permute.xlu0 %1177
    %1180 = vst.msk [vmem:[#allocation2 + $0x8] sm:$0xff] %vm501, %v1178
    %1181 = vrot.lane.b32.xlu0 %v158, 112
    %v1182 = vpop.permute.xlu0 %1181
    %1183 = vrot.lane.b32.xlu0 %v154, 80
    %v1184 = vpop.permute.xlu0 %1183
    %v1185 = vsel %vm168, %v1182, 0
    %v1187 = vsel %vm168, %v1184, 0
    %1189 = vmatprep.subr.mxu0 0.0
    %1190 = vmatpush1.xpose.msra.mxu0 %v1187
    %1191 = vmatprep.subr.mxu0 0.0
    %1192 = vmatpush1.xpose.msra.mxu0 0.0
    %1193 = vmatprep.subr.mxu0 0.0
    %1194 = vmatpush1.xpose.msra.mxu0 0.0
    %1195 = vmatprep.subr.mxu0 0.0
    %1196 = vmatpush1.xpose.msra.mxu0 0.0
    %1197 = vmatprep.subr.mxu0 0.0
    %1198 = vmatpush1.xpose.msra.mxu0 0.0
    %1199 = vmatprep.subr.mxu0 0.0
    %1200 = vmatpush1.xpose.msra.mxu0 0.0
    %1201 = vmatprep.subr.mxu0 0.0
    %1202 = vmatpush1.xpose.msra.mxu0 0.0
    %1203 = vmatprep.subr.mxu0 0.0
    %1204 = vmatpush1.xpose.msra.mxu0 0.0
    %1205 = vmatprep.subr.mxu0 0.0
    %1206 = vmatpush1.xpose.msra.mxu0 0.0
    %1207 = vmatprep.subr.mxu0 0.0
    %1208 = vmatpush1.xpose.msra.mxu0 0.0
    %1209 = vmatprep.subr.mxu0 0.0
    %1210 = vmatpush1.xpose.msra.mxu0 0.0
    %1211 = vmatprep.subr.mxu0 0.0
    %1212 = vmatpush1.xpose.msra.mxu0 0.0
    %1213 = vmatprep.subr.mxu0 0.0
    %1214 = vmatpush1.xpose.msra.mxu0 0.0
    %1215 = vmatprep.subr.mxu0 0.0
    %1216 = vmatpush1.xpose.msra.mxu0 0.0
    %1217 = vmatprep.subr.mxu0 0.0
    %1218 = vmatpush1.xpose.msra.mxu0 0.0
    %1219 = vmatprep.subr.mxu0 0.0
    %1220 = vmatpush1.xpose.msra.mxu0 0.0
    %1221 = vmatprep.subr.mxu0 0.0
    %1222 = vmatpush1.xpose.msra.mxu0 0.0
    %1223 = vmatprep.subr.mxu0 0.0
    %1224 = vmatpush1.xpose.msra.mxu0 0.0
    %1225 = vmatprep.subr.mxu0 0.0
    %1226 = vmatpush1.xpose.msra.mxu0 0.0
    %1227 = vmatprep.subr.mxu0 0.0
    %1228 = vmatpush1.xpose.msra.mxu0 0.0
    %1229 = vmatprep.subr.mxu0 0.0
    %1230 = vmatpush1.xpose.msra.mxu0 0.0
    %1231 = vmatprep.subr.mxu0 0.0
    %1232 = vmatpush1.xpose.msra.mxu0 0.0
    %1233 = vmatprep.subr.mxu0 0.0
    %1234 = vmatpush1.xpose.msra.mxu0 0.0
    %1235 = vmatprep.subr.mxu0 0.0
    %1236 = vmatpush1.xpose.msra.mxu0 0.0
    %1237 = vmatprep.subr.mxu0 0.0
    %1238 = vmatpush1.xpose.msra.mxu0 0.0
    %1239 = vmatprep.subr.mxu0 0.0
    %1240 = vmatpush1.xpose.msra.mxu0 0.0
    %1241 = vmatprep.subr.mxu0 0.0
    %1242 = vmatpush1.xpose.msra.mxu0 0.0
    %1243 = vmatprep.subr.mxu0 0.0
    %1244 = vmatpush1.xpose.msra.mxu0 0.0
    %1245 = vmatprep.subr.mxu0 0.0
    %1246 = vmatpush1.xpose.msra.mxu0 0.0
    %1247 = vmatprep.subr.mxu0 0.0
    %1248 = vmatpush1.xpose.msra.mxu0 0.0
    %1249 = vmatprep.subr.mxu0 0.0
    %1250 = vmatpush1.xpose.msra.mxu0 0.0
    %1251 = vmatprep.subr.mxu0 0.0
    %1252 = vmatpush1.xpose.msra.mxu0 0.0
    %1253 = vmatprep.mubr.f32.mxu0 0.0
    %1254 = vmatmul.mubr.f32.gmra.mrb[0].mxu0 %v1185
    %v1255 = vpop.f32.mrb[0].mxu0
    %v1256 = vadd.f32 %v164, %v1255
    %v1257 = vpop.f32.mrb[0].mxu0
    %1258 = vdwg.mxu0
    %v1259 = vsel %vm168, %v1256, -inf
    %1260 = vmax.xlane.f32.xlu0 %v1259
    %v1261 = vpop.xlane.xlu0 %1260
    %v1262 = vsub.f32 %v1256, %v1261
    %v1263 = vmul.f32 %v1262, 1.442695
    %v1264 = vpow.pop %v1263
    %v1265 = vsel %vm168, %v1264, 0.0
    %1266 = vadd.xlane.f32.xlu0 %v1265
    %v1267 = vpop.xlane.xlu0 %1266
    %v1268 = vrcp.pop %v1267
    %v1269 = vmul.f32 %v1264, %v1268
    %1270 = vrot.lane.b32.xlu0 %v154, 48
    %v1271 = vpop.permute.xlu0 %1270
    %v1274 = vsel %vm168, %v1269, 0
    %1276 = vmatprep.subr.mxu0 0.0
    %1277 = vmatpush1.msra.mxu0 %v1271
    %1278 = vmatprep.subr.mxu0 0.0
    %1279 = vmatpush1.msra.mxu0 0.0
    %1280 = vmatprep.subr.mxu0 0.0
    %1281 = vmatpush1.msra.mxu0 0.0
    %1282 = vmatprep.subr.mxu0 0.0
    %1283 = vmatpush1.msra.mxu0 0.0
    %1284 = vmatprep.subr.mxu0 0.0
    %1285 = vmatpush1.msra.mxu0 0.0
    %1286 = vmatprep.subr.mxu0 0.0
    %1287 = vmatpush1.msra.mxu0 0.0
    %1288 = vmatprep.subr.mxu0 0.0
    %1289 = vmatpush1.msra.mxu0 0.0
    %1290 = vmatprep.subr.mxu0 0.0
    %1291 = vmatpush1.msra.mxu0 0.0
    %1292 = vmatprep.subr.mxu0 0.0
    %1293 = vmatpush1.msra.mxu0 0.0
    %1294 = vmatprep.subr.mxu0 0.0
    %1295 = vmatpush1.msra.mxu0 0.0
    %1296 = vmatprep.subr.mxu0 0.0
    %1297 = vmatpush1.msra.mxu0 0.0
    %1298 = vmatprep.subr.mxu0 0.0
    %1299 = vmatpush1.msra.mxu0 0.0
    %1300 = vmatprep.subr.mxu0 0.0
    %1301 = vmatpush1.msra.mxu0 0.0
    %1302 = vmatprep.subr.mxu0 0.0
    %1303 = vmatpush1.msra.mxu0 0.0
    %1304 = vmatprep.subr.mxu0 0.0
    %1305 = vmatpush1.msra.mxu0 0.0
    %1306 = vmatprep.subr.mxu0 0.0
    %1307 = vmatpush1.msra.mxu0 0.0
    %1308 = vmatprep.subr.mxu0 0.0
    %1309 = vmatpush1.msra.mxu0 0.0
    %1310 = vmatprep.subr.mxu0 0.0
    %1311 = vmatpush1.msra.mxu0 0.0
    %1312 = vmatprep.subr.mxu0 0.0
    %1313 = vmatpush1.msra.mxu0 0.0
    %1314 = vmatprep.subr.mxu0 0.0
    %1315 = vmatpush1.msra.mxu0 0.0
    %1316 = vmatprep.subr.mxu0 0.0
    %1317 = vmatpush1.msra.mxu0 0.0
    %1318 = vmatprep.subr.mxu0 0.0
    %1319 = vmatpush1.msra.mxu0 0.0
    %1320 = vmatprep.subr.mxu0 0.0
    %1321 = vmatpush1.msra.mxu0 0.0
    %1322 = vmatprep.subr.mxu0 0.0
    %1323 = vmatpush1.msra.mxu0 0.0
    %1324 = vmatprep.subr.mxu0 0.0
    %1325 = vmatpush1.msra.mxu0 0.0
    %1326 = vmatprep.subr.mxu0 0.0
    %1327 = vmatpush1.msra.mxu0 0.0
    %1328 = vmatprep.subr.mxu0 0.0
    %1329 = vmatpush1.msra.mxu0 0.0
    %1330 = vmatprep.subr.mxu0 0.0
    %1331 = vmatpush1.msra.mxu0 0.0
    %1332 = vmatprep.subr.mxu0 0.0
    %1333 = vmatpush1.msra.mxu0 0.0
    %1334 = vmatprep.subr.mxu0 0.0
    %1335 = vmatpush1.msra.mxu0 0.0
    %1336 = vmatprep.subr.mxu0 0.0
    %1337 = vmatpush1.msra.mxu0 0.0
    %1338 = vmatprep.subr.mxu0 0.0
    %1339 = vmatpush1.msra.mxu0 0.0
    %1340 = vmatprep.mubr.f32.mxu0 0.0
    %1341 = vmatmul.mubr.f32.gmra.mrb[0].mxu0 %v1274
    %v1342 = vpop.f32.mrb[0].mxu0
    %v1343 = vadd.f32 0.0, %v1342
    %v1344 = vpop.f32.mrb[0].mxu0
    %1345 = vdwg.mxu0
    %1347 = vrot.lane.b32.xlu0 %v1343, 16
    %v1348 = vpop.permute.xlu0 %1347
    %1350 = vst.msk [vmem:[#allocation2 + $0x8] sm:$0xff] %vm672, %v1348
    %1351 = vrot.lane.b32.xlu0 %v158, 104
    %v1352 = vpop.permute.xlu0 %1351
    %1353 = vrot.lane.b32.xlu0 %v154, 72
    %v1354 = vpop.permute.xlu0 %1353
    %v1355 = vsel %vm168, %v1352, 0
    %v1357 = vsel %vm168, %v1354, 0
    %1359 = vmatprep.subr.mxu0 0.0
    %1360 = vmatpush1.xpose.msra.mxu0 %v1357
    %1361 = vmatprep.subr.mxu0 0.0
    %1362 = vmatpush1.xpose.msra.mxu0 0.0
    %1363 = vmatprep.subr.mxu0 0.0
    %1364 = vmatpush1.xpose.msra.mxu0 0.0
    %1365 = vmatprep.subr.mxu0 0.0
    %1366 = vmatpush1.xpose.msra.mxu0 0.0
    %1367 = vmatprep.subr.mxu0 0.0
    %1368 = vmatpush1.xpose.msra.mxu0 0.0
    %1369 = vmatprep.subr.mxu0 0.0
    %1370 = vmatpush1.xpose.msra.mxu0 0.0
    %1371 = vmatprep.subr.mxu0 0.0
    %1372 = vmatpush1.xpose.msra.mxu0 0.0
    %1373 = vmatprep.subr.mxu0 0.0
    %1374 = vmatpush1.xpose.msra.mxu0 0.0
    %1375 = vmatprep.subr.mxu0 0.0
    %1376 = vmatpush1.xpose.msra.mxu0 0.0
    %1377 = vmatprep.subr.mxu0 0.0
    %1378 = vmatpush1.xpose.msra.mxu0 0.0
    %1379 = vmatprep.subr.mxu0 0.0
    %1380 = vmatpush1.xpose.msra.mxu0 0.0
    %1381 = vmatprep.subr.mxu0 0.0
    %1382 = vmatpush1.xpose.msra.mxu0 0.0
    %1383 = vmatprep.subr.mxu0 0.0
    %1384 = vmatpush1.xpose.msra.mxu0 0.0
    %1385 = vmatprep.subr.mxu0 0.0
    %1386 = vmatpush1.xpose.msra.mxu0 0.0
    %1387 = vmatprep.subr.mxu0 0.0
    %1388 = vmatpush1.xpose.msra.mxu0 0.0
    %1389 = vmatprep.subr.mxu0 0.0
    %1390 = vmatpush1.xpose.msra.mxu0 0.0
    %1391 = vmatprep.subr.mxu0 0.0
    %1392 = vmatpush1.xpose.msra.mxu0 0.0
    %1393 = vmatprep.subr.mxu0 0.0
    %1394 = vmatpush1.xpose.msra.mxu0 0.0
    %1395 = vmatprep.subr.mxu0 0.0
    %1396 = vmatpush1.xpose.msra.mxu0 0.0
    %1397 = vmatprep.subr.mxu0 0.0
    %1398 = vmatpush1.xpose.msra.mxu0 0.0
    %1399 = vmatprep.subr.mxu0 0.0
    %1400 = vmatpush1.xpose.msra.mxu0 0.0
    %1401 = vmatprep.subr.mxu0 0.0
    %1402 = vmatpush1.xpose.msra.mxu0 0.0
    %1403 = vmatprep.subr.mxu0 0.0
    %1404 = vmatpush1.xpose.msra.mxu0 0.0
    %1405 = vmatprep.subr.mxu0 0.0
    %1406 = vmatpush1.xpose.msra.mxu0 0.0
    %1407 = vmatprep.subr.mxu0 0.0
    %1408 = vmatpush1.xpose.msra.mxu0 0.0
    %1409 = vmatprep.subr.mxu0 0.0
    %1410 = vmatpush1.xpose.msra.mxu0 0.0
    %1411 = vmatprep.subr.mxu0 0.0
    %1412 = vmatpush1.xpose.msra.mxu0 0.0
    %1413 = vmatprep.subr.mxu0 0.0
    %1414 = vmatpush1.xpose.msra.mxu0 0.0
    %1415 = vmatprep.subr.mxu0 0.0
    %1416 = vmatpush1.xpose.msra.mxu0 0.0
    %1417 = vmatprep.subr.mxu0 0.0
    %1418 = vmatpush1.xpose.msra.mxu0 0.0
    %1419 = vmatprep.subr.mxu0 0.0
    %1420 = vmatpush1.xpose.msra.mxu0 0.0
    %1421 = vmatprep.subr.mxu0 0.0
    %1422 = vmatpush1.xpose.msra.mxu0 0.0
    %1423 = vmatprep.mubr.f32.mxu0 0.0
    %1424 = vmatmul.mubr.f32.gmra.mrb[0].mxu0 %v1355
    %v1425 = vpop.f32.mrb[0].mxu0
    %v1426 = vadd.f32 %v164, %v1425
    %v1427 = vpop.f32.mrb[0].mxu0
    %1428 = vdwg.mxu0
    %v1429 = vsel %vm168, %v1426, -inf
    %1430 = vmax.xlane.f32.xlu0 %v1429
    %v1431 = vpop.xlane.xlu0 %1430
    %v1432 = vsub.f32 %v1426, %v1431
    %v1433 = vmul.f32 %v1432, 1.442695
    %v1434 = vpow.pop %v1433
    %v1435 = vsel %vm168, %v1434, 0.0
    %1436 = vadd.xlane.f32.xlu0 %v1435
    %v1437 = vpop.xlane.xlu0 %1436
    %v1438 = vrcp.pop %v1437
    %v1439 = vmul.f32 %v1434, %v1438
    %1440 = vrot.lane.b32.xlu0 %v154, 40
    %v1441 = vpop.permute.xlu0 %1440
    %v1444 = vsel %vm168, %v1439, 0
    %1446 = vmatprep.subr.mxu0 0.0
    %1447 = vmatpush1.msra.mxu0 %v1441
    %1448 = vmatprep.subr.mxu0 0.0
    %1449 = vmatpush1.msra.mxu0 0.0
    %1450 = vmatprep.subr.mxu0 0.0
    %1451 = vmatpush1.msra.mxu0 0.0
    %1452 = vmatprep.subr.mxu0 0.0
    %1453 = vmatpush1.msra.mxu0 0.0
    %1454 = vmatprep.subr.mxu0 0.0
    %1455 = vmatpush1.msra.mxu0 0.0
    %1456 = vmatprep.subr.mxu0 0.0
    %1457 = vmatpush1.msra.mxu0 0.0
    %1458 = vmatprep.subr.mxu0 0.0
    %1459 = vmatpush1.msra.mxu0 0.0
    %1460 = vmatprep.subr.mxu0 0.0
    %1461 = vmatpush1.msra.mxu0 0.0
    %1462 = vmatprep.subr.mxu0 0.0
    %1463 = vmatpush1.msra.mxu0 0.0
    %1464 = vmatprep.subr.mxu0 0.0
    %1465 = vmatpush1.msra.mxu0 0.0
    %1466 = vmatprep.subr.mxu0 0.0
    %1467 = vmatpush1.msra.mxu0 0.0
    %1468 = vmatprep.subr.mxu0 0.0
    %1469 = vmatpush1.msra.mxu0 0.0
    %1470 = vmatprep.subr.mxu0 0.0
    %1471 = vmatpush1.msra.mxu0 0.0
    %1472 = vmatprep.subr.mxu0 0.0
    %1473 = vmatpush1.msra.mxu0 0.0
    %1474 = vmatprep.subr.mxu0 0.0
    %1475 = vmatpush1.msra.mxu0 0.0
    %1476 = vmatprep.subr.mxu0 0.0
    %1477 = vmatpush1.msra.mxu0 0.0
    %1478 = vmatprep.subr.mxu0 0.0
    %1479 = vmatpush1.msra.mxu0 0.0
    %1480 = vmatprep.subr.mxu0 0.0
    %1481 = vmatpush1.msra.mxu0 0.0
    %1482 = vmatprep.subr.mxu0 0.0
    %1483 = vmatpush1.msra.mxu0 0.0
    %1484 = vmatprep.subr.mxu0 0.0
    %1485 = vmatpush1.msra.mxu0 0.0
    %1486 = vmatprep.subr.mxu0 0.0
    %1487 = vmatpush1.msra.mxu0 0.0
    %1488 = vmatprep.subr.mxu0 0.0
    %1489 = vmatpush1.msra.mxu0 0.0
    %1490 = vmatprep.subr.mxu0 0.0
    %1491 = vmatpush1.msra.mxu0 0.0
    %1492 = vmatprep.subr.mxu0 0.0
    %1493 = vmatpush1.msra.mxu0 0.0
    %1494 = vmatprep.subr.mxu0 0.0
    %1495 = vmatpush1.msra.mxu0 0.0
    %1496 = vmatprep.subr.mxu0 0.0
    %1497 = vmatpush1.msra.mxu0 0.0
    %1498 = vmatprep.subr.mxu0 0.0
    %1499 = vmatpush1.msra.mxu0 0.0
    %1500 = vmatprep.subr.mxu0 0.0
    %1501 = vmatpush1.msra.mxu0 0.0
    %1502 = vmatprep.subr.mxu0 0.0
    %1503 = vmatpush1.msra.mxu0 0.0
    %1504 = vmatprep.subr.mxu0 0.0
    %1505 = vmatpush1.msra.mxu0 0.0
    %1506 = vmatprep.subr.mxu0 0.0
    %1507 = vmatpush1.msra.mxu0 0.0
    %1508 = vmatprep.subr.mxu0 0.0
    %1509 = vmatpush1.msra.mxu0 0.0
    %1510 = vmatprep.mubr.f32.mxu0 0.0
    %1511 = vmatmul.mubr.f32.gmra.mrb[0].mxu0 %v1444
    %v1512 = vpop.f32.mrb[0].mxu0
    %v1513 = vadd.f32 0.0, %v1512
    %v1514 = vpop.f32.mrb[0].mxu0
    %1515 = vdwg.mxu0
    %1517 = vrot.lane.b32.xlu0 %v1513, 24
    %v1518 = vpop.permute.xlu0 %1517
    %1520 = vst.msk [vmem:[#allocation2 + $0x8] sm:$0xff] %vm843, %v1518
    %v1521 = vld [vmem:[#allocation2] sm:$0xff]
    %v1522 = vld [vmem:[#allocation2 + $0x8] sm:$0xff]
    %v1523 = vld [vmem:[#allocation8] sm:$0xff]
    %v1524 = vld [vmem:[#allocation8 + $0x8] sm:$0xff]
    %v1525 = vld [vmem:[#allocation8 + $0x10] sm:$0xff]
    %v1526 = vld [vmem:[#allocation8 + $0x18] sm:$0xff]
    %v1527 = vld [vmem:[%s4] sm:$0x1]
    %v1529 = vlaneseq
    %v1530 = vshrl.u32 %v1529, 7
    %v1531 = vsub.s32 0, %v1530
    %v1532 = vrot.slane %v1527, %v1531
    %v1535 = vsel %vm75, %v1521, 0
    %v1538 = vsel %vm75, %v1522, 0
    %1540 = vmatprep.subr.mxu0 0.0
    %1541 = vmatpush1.msra.mxu0 %v1523
    %1542 = vmatprep.subr.mxu0 0.0
    %1543 = vmatpush1.msra.mxu0 %v1524
    %1544 = vmatprep.subr.mxu0 0.0
    %1545 = vmatpush1.msra.mxu0 %v1525
    %1546 = vmatprep.subr.mxu0 0.0
    %1547 = vmatpush1.msra.mxu0 %v1526
    %1548 = vmatprep.subr.mxu0 0.0
    %1549 = vmatpush1.msra.mxu0 0.0
    %1550 = vmatprep.subr.mxu0 0.0
    %1551 = vmatpush1.msra.mxu0 0.0
    %1552 = vmatprep.subr.mxu0 0.0
    %1553 = vmatpush1.msra.mxu0 0.0
    %1554 = vmatprep.subr.mxu0 0.0
    %1555 = vmatpush1.msra.mxu0 0.0
    %1556 = vmatprep.subr.mxu0 0.0
    %1557 = vmatpush1.msra.mxu0 0.0
    %1558 = vmatprep.subr.mxu0 0.0
    %1559 = vmatpush1.msra.mxu0 0.0
    %1560 = vmatprep.subr.mxu0 0.0
    %1561 = vmatpush1.msra.mxu0 0.0
    %1562 = vmatprep.subr.mxu0 0.0
    %1563 = vmatpush1.msra.mxu0 0.0
    %1564 = vmatprep.subr.mxu0 0.0
    %1565 = vmatpush1.msra.mxu0 0.0
    %1566 = vmatprep.subr.mxu0 0.0
    %1567 = vmatpush1.msra.mxu0 0.0
    %1568 = vmatprep.subr.mxu0 0.0
    %1569 = vmatpush1.msra.mxu0 0.0
    %1570 = vmatprep.subr.mxu0 0.0
    %1571 = vmatpush1.msra.mxu0 0.0
    %1572 = vmatprep.subr.mxu0 0.0
    %1573 = vmatpush1.msra.mxu0 0.0
    %1574 = vmatprep.subr.mxu0 0.0
    %1575 = vmatpush1.msra.mxu0 0.0
    %1576 = vmatprep.subr.mxu0 0.0
    %1577 = vmatpush1.msra.mxu0 0.0
    %1578 = vmatprep.subr.mxu0 0.0
    %1579 = vmatpush1.msra.mxu0 0.0
    %1580 = vmatprep.subr.mxu0 0.0
    %1581 = vmatpush1.msra.mxu0 0.0
    %1582 = vmatprep.subr.mxu0 0.0
    %1583 = vmatpush1.msra.mxu0 0.0
    %1584 = vmatprep.subr.mxu0 0.0
    %1585 = vmatpush1.msra.mxu0 0.0
    %1586 = vmatprep.subr.mxu0 0.0
    %1587 = vmatpush1.msra.mxu0 0.0
    %1588 = vmatprep.subr.mxu0 0.0
    %1589 = vmatpush1.msra.mxu0 0.0
    %1590 = vmatprep.subr.mxu0 0.0
    %1591 = vmatpush1.msra.mxu0 0.0
    %1592 = vmatprep.subr.mxu0 0.0
    %1593 = vmatpush1.msra.mxu0 0.0
    %1594 = vmatprep.subr.mxu0 0.0
    %1595 = vmatpush1.msra.mxu0 0.0
    %1596 = vmatprep.subr.mxu0 0.0
    %1597 = vmatpush1.msra.mxu0 0.0
    %1598 = vmatprep.subr.mxu0 0.0
    %1599 = vmatpush1.msra.mxu0 0.0
    %1600 = vmatprep.subr.mxu0 0.0
    %1601 = vmatpush1.msra.mxu0 0.0
    %1602 = vmatprep.subr.mxu0 0.0
    %1603 = vmatpush1.msra.mxu0 0.0
    %1604 = vmatprep.mubr.f32.mxu0 0.0
    %1605 = vmatmul.mubr.f32.gmra.mrb[0].mxu0 %v1535
    %v1606 = vpop.f32.mrb[0].mxu0
    %v1607 = vadd.f32 %v1532, %v1606
    %v1608 = vpop.f32.mrb[0].mxu0
    %1609 = vmatprep.mubr.f32.mxu0 0.0
    %1610 = vmatmul.mubr.f32.gmra.mrb[0].mxu0 %v1538
    %v1611 = vpop.f32.mrb[0].mxu0
    %v1612 = vadd.f32 %v1532, %v1611
    %v1613 = vpop.f32.mrb[0].mxu0
    %1614 = vdwg.mxu0
    %1615 = vst.msk [vmem:[#allocation9] sm:$0xff] %vm75, %v1607
    %1616 = vst.msk [vmem:[#allocation9 + $0x8] sm:$0xff] %vm75, %v1612
    // Predicated region
    $region34: #{tpu_custom_call.1} parent=1 // pred_check
      _
    $region35: #{tpu_custom_call.1} parent=1 // pred_check_branch
      %1618 = sbr.rel (0) target = $region37
    $region36: #{tpu_custom_call.1} parent=1 // pred_region
      %s1620 = ssub.s32 256, 256
      %1621 = vsyncadd [#allocation5], %s1620
      %s1622 = sshll.u32 [#allocation9], 4
      %s1623 = int_to_ptr.vmem [resolvable:$true] %s1622
      %1628 = dma.vmem_to_hbm [thread:$0]  %s1623, 256, %s5, [#allocation5], 128, 128, 8
    $region37: #{tpu_custom_call.1} parent=1 // pred_fallthru
      _
    // Predicated region
    $region38: #{tpu_custom_call.1} parent=1 // pred_check
      _
    $region39: #{tpu_custom_call.1} parent=1 // pred_check_branch
      %1630 = sbr.rel (0) target = $region41
    $region40: #{tpu_custom_call.1} parent=1 // pred_region
      %1631 = dma.done [#allocation5], 256
    $region41: #{tpu_custom_call.1} parent=1 // pred_fallthru
      _
    %1632 = vsyncpa [#allocation4], 1
    %1633 = vsyncpa [#allocation7], 1
    %1634 = vsyncpa [#allocation5], 1

</llo_original>
